<compile_context>
chip_gen: v6e
topology: v6e:2x2x1
jax: 0.10.0
libtpu: 0.0.40
codegen_flags: <defaults>
</compile_context>

<pallas_src>
import jax
import jax.numpy as jnp
import numpy as np
from jax.experimental import pallas as pl
from jax.experimental.pallas import tpu as pltpu


def _make_kernel(c, ca, tk, resident_x2, exp_dtype):
    """Builds the (b, qi, ki) grid-step kernel.

    x1_ref : (TQ, C)        pixels-major query tile, bf16
    x2_ref : (C+1, HW)      resident augmented key/value slab, bf16   [resident]
             (C+1, TK)      streamed kv tile, bf16                    [fallback]
    a_ref  : (C, C+1)       A_aug  = theta_W^T @ phi_W, zero-padded col (bf16)
    v_ref  : (1, C+1)       v_aug  = theta_b @ phi_W, zero-padded col   (f32)
    mw_ref : (C, C)         M      = W_W @ g_W                          (bf16)
    b_ref  : (C, 1)         b_out  = W_W @ g_b + W_b                    (f32)
    out_ref: (C, TQ)        lane-dense output tile (written on last kv step)
    scratch: theta (TQ, C+1) bf16, mx (TQ, 1) f32, acc (TQ, C+1) f32
             (acc's last column carries the running softmax denominator).
    """

    def kernel(x1_ref, x2_ref, a_ref, v_ref, mw_ref, b_ref, out_ref,
               theta_ref, mx_ref, acc_ref):
        ki = pl.program_id(2)
        nk = pl.num_programs(2)

        # ---- per query-tile init: fused theta projection + flash state ----
        @pl.when(ki == 0)
        def _init():
            th = jnp.dot(x1_ref[...], a_ref[...],
                         preferred_element_type=jnp.float32)            # (TQ, C+1)
            theta_ref[...] = (th + v_ref[...]).astype(jnp.bfloat16)
            mx_ref[...] = jnp.full(mx_ref.shape, -jnp.inf, mx_ref.dtype)
            acc_ref[...] = jnp.zeros(acc_ref.shape, acc_ref.dtype)

        if resident_x2:
            start = pl.multiple_of(ki * tk, tk)
            x2t = x2_ref[:, pl.ds(start, tk)]                            # (C+1, TK)
        else:
            x2t = x2_ref[...]                                            # (C+1, TK)

        # ---- scores tile (phi folded into theta; bf16 MXU, f32 acc) ----
        scores = jnp.dot(theta_ref[...], x2t,
                         preferred_element_type=jnp.float32)             # (TQ, TK)

        # ---- online softmax; row-sum rides x2's ones channel on the MXU ----
        m_prev = mx_ref[...]
        m_new = jnp.maximum(m_prev, jnp.max(scores, axis=-1, keepdims=True))
        alpha = jnp.exp(m_prev - m_new)                                  # (TQ, 1) f32
        p = jnp.exp((scores - m_new).astype(exp_dtype)).astype(jnp.bfloat16)
        pv = jax.lax.dot_general(p, x2t, (((1,), (1,)), ((), ())),
                                 preferred_element_type=jnp.float32)     # (TQ, C+1)
        acc_ref[...] = alpha * acc_ref[...] + pv
        mx_ref[...] = m_new

        # ---- finalize: normalize, fused g+W projection, lane-dense store ----
        @pl.when(ki == nk - 1)
        def _finalize():
            acc = acc_ref[...]
            inv_l = pl.reciprocal(acc[:, c:], approx=True)               # (TQ, 1)
            ctx = (acc[:, :c] * inv_l).astype(jnp.bfloat16)              # (TQ, C)
            y_t = jax.lax.dot_general(mw_ref[...], ctx,
                                      (((1,), (1,)), ((), ())),
                                      preferred_element_type=jnp.float32)  # (C, TQ)
            out_ref[...] = (y_t + b_ref[...]).astype(out_ref.dtype)

    return kernel


def _pick_tile(hw):
    # Prefer 256 (fills the 256x256 MXU on v6e/v7x and amortizes the ~0.35us
    # per-grid-step overhead); fall back to 128 / 512 / the full extent.
    for t in (256, 128, 512):
        if hw % t == 0:
            return t
    return hw  # single full-extent block (flash tiling degenerates but is correct)


def _padded_bytes(shape, dtype):
    """VMEM footprint of one buffer after (sublane, lane) padding."""
    itemsize = jnp.dtype(dtype).itemsize
    dims = list(shape)
    dims[-1] = -(-dims[-1] // 128) * 128
    if len(dims) >= 2:
        sub = 8 * max(1, 4 // itemsize)          # 8 for f32, 16 for bf16
        dims[-2] = -(-dims[-2] // sub) * sub
    n = itemsize
    for d in dims:
        n *= d
    return n


def attention_slice_pallas(x1_nchw, x2_nchw, params, *, tq=None, tk=None,
                           exp_dtype=jnp.bfloat16):
    B, C, H, W = x1_nchw.shape
    HW = H * W
    out_dtype = x1_nchw.dtype
    ca = C + 1   # x2 gains an all-ones channel -> softmax row-sum on the MXU

    if tq is None:
        tq = _pick_tile(HW)
    if tk is None:
        tk = _pick_tile(HW)
    assert HW % tq == 0 and HW % tk == 0, (HW, tq, tk)

    # ---- algebraic folds (exact: the dropped theta.phi_b term is constant
    # ---- per query row so softmax is invariant to it, and g_b folds into the
    # ---- output bias because softmax rows sum to one) ----
    A = params["theta_wT"] @ params["phi_w"]                              # (C, C)
    v = params["theta_b"] @ params["phi_w"]                               # (1, C)
    a_aug = jnp.concatenate([A, jnp.zeros((C, 1), A.dtype)], axis=1)      # (C, C+1)
    a_aug = a_aug.astype(jnp.bfloat16)
    v_aug = jnp.concatenate([v, jnp.zeros((1, 1), v.dtype)], axis=1)      # (1, C+1)
    m_w = (params["W_w"] @ params["g_w"]).astype(jnp.bfloat16)            # (C, C)
    b_out = params["W_w"] @ params["g_b"] + params["W_b"]                 # (C, 1)

    # ---- layout glue (bf16 MXU operands).  x1 pixels-major keeps all
    # ---- in-kernel matmuls in MXU-native NN / NT form. ----
    x1_pm = jnp.transpose(x1_nchw, (0, 2, 3, 1)).reshape(B, HW, C)
    x1_pm = x1_pm.astype(jnp.bfloat16)                                    # (B, HW, C)
    x2_cm = x2_nchw.reshape(B, C, HW).astype(jnp.bfloat16)                # (B, C, HW)
    x2_aug = jnp.concatenate(
        [x2_cm, jnp.ones((B, 1, HW), jnp.bfloat16)], axis=1)             # (B, C+1, HW)

    # ---- VMEM budget: keep x2 resident across query tiles when it fits ----
    def vmem_bytes(resident):
        return (2 * _padded_bytes((tq, C), jnp.bfloat16)                  # x1 blocks
                + 2 * _padded_bytes((ca, HW if resident else tk), jnp.bfloat16)
                + 2 * _padded_bytes((C, tq), out_dtype)                   # out blocks
                + 2 * (_padded_bytes((C, ca), jnp.bfloat16)
                       + _padded_bytes((1, ca), jnp.float32)
                       + _padded_bytes((C, C), jnp.bfloat16)
                       + _padded_bytes((C, 1), jnp.float32))              # weights
                + _padded_bytes((tq, ca), jnp.bfloat16)                   # theta
                + _padded_bytes((tq, 1), jnp.float32)                     # running max
                + _padded_bytes((tq, ca), jnp.float32)                    # accumulator
                + 4 * _padded_bytes((tq, tk), jnp.float32))               # scores/p temps

    resident_x2 = vmem_bytes(True) <= 44 * 1024 * 1024    # headroom inside v7x's 64 MiB
    vmem_limit = int(min(max(int(vmem_bytes(resident_x2) * 1.25),
                             32 * 1024 * 1024), 60 * 1024 * 1024))

    nq, nk = HW // tq, HW // tk
    grid = (B, nq, nk)
    wmap = lambda b, qi, ki: (0, 0)

    if resident_x2:
        x2_spec = pl.BlockSpec((None, ca, HW), lambda b, qi, ki: (b, 0, 0))
    else:
        x2_spec = pl.BlockSpec((None, ca, tk), lambda b, qi, ki: (b, 0, ki))

    # Advisory cost estimate: byte counts now reflect the actual traffic
    # (x2 read once per batch when resident, nq times when streamed).
    flops = B * (2 * HW * C * ca + 4 * HW * HW * ca + 2 * HW * C * C)
    transc = B * (HW * HW + HW * nk + HW)
    bytes_accessed = int(
        B * HW * C * 2
        + B * HW * ca * 2 * (1 if resident_x2 else nq)
        + B * HW * C * jnp.dtype(out_dtype).itemsize
        + 2 * (C * ca + ca + C * C + C) * 4)

    kernel = _make_kernel(C, ca, tk, resident_x2, exp_dtype)

    y_cm = pl.pallas_call(
        kernel,
        out_shape=jax.ShapeDtypeStruct((B, C, HW), out_dtype),
        grid_spec=pltpu.PrefetchScalarGridSpec(
            num_scalar_prefetch=0,
            grid=grid,
            in_specs=[
                pl.BlockSpec((None, tq, C), lambda b, qi, ki: (b, qi, 0)),  # x1
                x2_spec,                                                    # x2_aug
                pl.BlockSpec((C, ca), wmap),    # A_aug
                pl.BlockSpec((1, ca), wmap),    # v_aug
                pl.BlockSpec((C, C), wmap),     # M = W_W @ g_W
                pl.BlockSpec((C, 1), wmap),     # b_out
            ],
            out_specs=pl.BlockSpec((None, C, tq), lambda b, qi, ki: (b, 0, qi)),
            scratch_shapes=[
                pltpu.VMEM((tq, ca), jnp.bfloat16),   # folded-theta tile
                pltpu.VMEM((tq, 1), jnp.float32),     # running max
                pltpu.VMEM((tq, ca), jnp.float32),    # acc (+ denom column)
            ],
        ),
        compiler_params=pltpu.CompilerParams(
            dimension_semantics=("parallel", "parallel", "arbitrary"),
            vmem_limit_bytes=vmem_limit,
        ),
        cost_estimate=pl.CostEstimate(flops=int(flops),
                                      transcendentals=int(transc),
                                      bytes_accessed=bytes_accessed),
    )(x1_pm, x2_aug, a_aug, v_aug, m_w, b_out)

    # torch.cat((W(out), x1), dim=1) -> channel concat in NCHW (wrapper glue).
    y_nchw = y_cm.reshape(B, C, H, W)
    return jnp.concatenate([y_nchw, x1_nchw], axis=1)


def make_params(key, in_channels, inter_channels, eps=1e-5):
    """Deterministic Conv2d(1x1)+BN params, pre-fused to per-branch (W_eff, b_eff).

    Conv weight (cout, cin), bias (cout,); BN init: gamma=1, beta=0,
    running_mean=0, running_var=1 (PyTorch defaults, eval mode).
    Dropout2d is identity at eval.
    """
    def fused(k, cin, cout):
        kw, kb = jax.random.split(k)
        w = jax.random.normal(kw, (cout, cin), jnp.float32) * 0.1
        b = jax.random.normal(kb, (cout,), jnp.float32) * 0.1
        gamma = jnp.ones((cout,), jnp.float32)
        beta = jnp.zeros((cout,), jnp.float32)
        mean = jnp.zeros((cout,), jnp.float32)
        var = jnp.ones((cout,), jnp.float32)
        scale = gamma / jnp.sqrt(var + eps)
        w_eff = w * scale[:, None]              # (cout, cin)
        b_eff = scale * (b - mean) + beta       # (cout,)
        return w_eff, b_eff

    k1, k2, k3, k4 = jax.random.split(key, 4)
    tw, tb = fused(k1, in_channels, inter_channels)
    pw, pb = fused(k2, in_channels, inter_channels)
    gw, gb = fused(k3, in_channels, inter_channels)
    ww, wb = fused(k4, inter_channels, in_channels)
    return dict(
        theta_wT=tw.T,            # (C, IC)
        theta_b=tb[None, :],      # (1, IC)
        phi_w=pw,                 # (IC, C)
        phi_b=pb[:, None],        # (IC, 1)
        g_w=gw,                   # (IC, C)
        g_b=gb[:, None],          # (IC, 1)
        W_w=ww,                   # (C, IC)
        W_b=wb[:, None],          # (C, 1)
    )


def attention_slice_ref(x1_nchw, x2_nchw, params):
    """Pure-JAX reference with the ORIGINAL (un-folded) math in f32."""
    B, C, H, W = x1_nchw.shape
    HW = H * W
    x1 = jnp.transpose(x1_nchw, (0, 2, 3, 1)).reshape(B, HW, C)
    x2 = jnp.transpose(x2_nchw, (0, 2, 3, 1)).reshape(B, HW, C)
    theta = x1 @ params["theta_wT"] + params["theta_b"]          # (B, HW, IC)
    phi = x2 @ params["phi_w"].T + params["phi_b"][:, 0]         # (B, HW, IC)
    g = x2 @ params["g_w"].T + params["g_b"][:, 0]               # (B, HW, IC)
    scores = jnp.einsum("bqi,bki->bqk", theta, phi)
    attn = jax.nn.softmax(scores, axis=-1)
    ctx = jnp.einsum("bqk,bki->bqi", attn, g)
    y = ctx @ params["W_w"].T + params["W_b"][:, 0]              # (B, HW, C)
    y = jnp.transpose(y.reshape(B, H, W, C), (0, 3, 1, 2))       # (B, C, H, W)
    return jnp.concatenate([y, x1_nchw], axis=1)


# TODO(synk): is_3d=True variant and training-mode BatchNorm/Dropout statistics
# are not implemented in-kernel (eval-mode affine fusion only; 3D differs only
# in the wrapper reshape since D*H*W flattens identically).

if __name__ == "__main__":
    B, C, H, W = 2, 4, 16, 16
    IC = max(C // 2, 1)

    key = jax.random.PRNGKey(0)
    kx1, kx2, kp = jax.random.split(key, 3)
    x1 = jax.random.normal(kx1, (B, C, H, W), jnp.float32)
    x2 = jax.random.normal(kx2, (B, C, H, W), jnp.float32)
    params = make_params(kp, C, IC)

    fn = jax.jit(attention_slice_pallas)
    out = jax.block_until_ready(fn(x1, x2, params))

    ref = jax.block_until_ready(attention_slice_ref(x1, x2, params))
    assert out.shape == (B, 2 * C, H, W), out.shape
    # bf16 MXU operands / bf16 exp / approx reciprocal vs full-f32 reference.
    np.testing.assert_allclose(np.asarray(out), np.asarray(ref), atol=2e-2, rtol=2e-2)

    print("KERNEL_OK")
</pallas_src>

<mosaic_0001>
module attributes {stable_mosaic.version = 11 : i64} {
  func.func @kernel(%arg0: i32, %arg1: i32, %arg2: i32, %arg3: memref<1x256x4xbf16, #tpu.memory_space<vmem>>, %arg4: memref<1x5x256xbf16, #tpu.memory_space<vmem>>, %arg5: memref<4x5xbf16, #tpu.memory_space<vmem>>, %arg6: memref<1x5xf32, #tpu.memory_space<vmem>>, %arg7: memref<4x4xbf16, #tpu.memory_space<vmem>>, %arg8: memref<4x1xf32, #tpu.memory_space<vmem>>, %arg9: memref<1x4x256xf32, #tpu.memory_space<vmem>>, %arg10: memref<256x5xbf16, #tpu.memory_space<vmem>>, %arg11: memref<256x1xf32, #tpu.memory_space<vmem>>, %arg12: memref<256x5xf32, #tpu.memory_space<vmem>>) attributes {dimension_semantics = [#tpu.dimension_semantics<parallel>, #tpu.dimension_semantics<parallel>, #tpu.dimension_semantics<arbitrary>], iteration_bounds = array<i64: 2, 1, 1>, scalar_prefetch = 0 : i64, scratch_operands = 3 : i64, tpu.core_type = #tpu.core_type<tc>, window_params = [{transform_indices = @transform_0, window_bounds = array<i64: 1, 256, 4>}, {transform_indices = @transform_1, window_bounds = array<i64: 1, 5, 256>}, {pipeline_mode = #tpu.pipeline_mode<synchronous>, transform_indices = @transform_2, window_bounds = array<i64: 4, 5>}, {pipeline_mode = #tpu.pipeline_mode<synchronous>, transform_indices = @transform_3, window_bounds = array<i64: 1, 5>}, {pipeline_mode = #tpu.pipeline_mode<synchronous>, transform_indices = @transform_4, window_bounds = array<i64: 4, 4>}, {pipeline_mode = #tpu.pipeline_mode<synchronous>, transform_indices = @transform_5, window_bounds = array<i64: 4, 1>}, {transform_indices = @transform_6, window_bounds = array<i64: 1, 4, 256>}]} {
    %c0_i32 = arith.constant 0 : i32
    %0 = arith.cmpi eq, %arg2, %c0_i32 : i32
    %1 = arith.extui %0 : i1 to i32
    %c0_i32_0 = arith.constant 0 : i32
    %2 = arith.cmpi ne, %1, %c0_i32_0 : i32
    scf.if %2 {
      %c0_16 = arith.constant 0 : index
      %c0_17 = arith.constant 0 : index
      %c0_18 = arith.constant 0 : index
      %30 = vector.load %arg3[%c0_16, %c0_17, %c0_18] : memref<1x256x4xbf16, #tpu.memory_space<vmem>>, vector<1x256x4xbf16>
      %31 = vector.shape_cast %30 : vector<1x256x4xbf16> to vector<256x4xbf16>
      %c0_19 = arith.constant 0 : index
      %c0_20 = arith.constant 0 : index
      %32 = vector.load %arg5[%c0_19, %c0_20] : memref<4x5xbf16, #tpu.memory_space<vmem>>, vector<4x5xbf16>
      %cst_21 = arith.constant dense<0.000000e+00> : vector<256x5xf32>
      %33 = tpu.matmul %31, %32, %cst_21 {dimension_numbers = #tpu.dot_dimension_numbers<[1], [0], [0], [1], [0, 0, 1, 1], [], []>} : vector<256x4xbf16>, vector<4x5xbf16>, vector<256x5xf32> -> vector<256x5xf32>
      %c0_22 = arith.constant 0 : index
      %c0_23 = arith.constant 0 : index
      %34 = vector.load %arg6[%c0_22, %c0_23] : memref<1x5xf32, #tpu.memory_space<vmem>>, vector<1x5xf32>
      %35 = vector.broadcast %34 : vector<1x5xf32> to vector<256x5xf32>
      %36 = arith.addf %33, %35 : vector<256x5xf32>
      %37 = arith.truncf %36 : vector<256x5xf32> to vector<256x5xbf16>
      %c0_24 = arith.constant 0 : index
      %c0_25 = arith.constant 0 : index
      %38 = vector.load %arg10[%c0_24, %c0_25] : memref<256x5xbf16, #tpu.memory_space<vmem>>, vector<256x5xbf16>
      tpu.vector_store %arg10[%c0_24, %c0_25], %37 {strides = array<i32>} : memref<256x5xbf16, #tpu.memory_space<vmem>>, vector<256x5xbf16>,
      %cst_26 = arith.constant 0xFF800000 : f32
      %39 = vector.broadcast %cst_26 : f32 to vector<256x1xf32>
      %c0_27 = arith.constant 0 : index
      %c0_28 = arith.constant 0 : index
      %40 = vector.load %arg11[%c0_27, %c0_28] : memref<256x1xf32, #tpu.memory_space<vmem>>, vector<256x1xf32>
      tpu.vector_store %arg11[%c0_27, %c0_28], %39 {strides = array<i32>} : memref<256x1xf32, #tpu.memory_space<vmem>>, vector<256x1xf32>,
      %cst_29 = arith.constant 0.000000e+00 : f32
      %41 = vector.broadcast %cst_29 : f32 to vector<256x5xf32>
      %c0_30 = arith.constant 0 : index
      %c0_31 = arith.constant 0 : index
      %42 = vector.load %arg12[%c0_30, %c0_31] : memref<256x5xf32, #tpu.memory_space<vmem>>, vector<256x5xf32>
      tpu.vector_store %arg12[%c0_30, %c0_31], %41 {strides = array<i32>} : memref<256x5xf32, #tpu.memory_space<vmem>>, vector<256x5xf32>,
    } else {
    }
    %c256_i32 = arith.constant 256 : i32
    %3 = arith.muli %arg2, %c256_i32 : i32
    %4 = tpu.assume_multiple %3, 256 : i32
    %c0 = arith.constant 0 : index
    %c0_1 = arith.constant 0 : index
    %5 = arith.index_cast %4 : i32 to index
    %6 = vector.load %arg4[%c0, %c0_1, %5] : memref<1x5x256xbf16, #tpu.memory_space<vmem>>, vector<1x5x256xbf16>
    %7 = vector.shape_cast %6 : vector<1x5x256xbf16> to vector<5x256xbf16>
    %c0_2 = arith.constant 0 : index
    %c0_3 = arith.constant 0 : index
    %8 = vector.load %arg10[%c0_2, %c0_3] : memref<256x5xbf16, #tpu.memory_space<vmem>>, vector<256x5xbf16>
    %cst = arith.constant dense<0.000000e+00> : vector<256x256xf32>
    %9 = tpu.matmul %8, %7, %cst {dimension_numbers = #tpu.dot_dimension_numbers<[1], [0], [0], [1], [0, 0, 1, 1], [], []>} : vector<256x5xbf16>, vector<5x256xbf16>, vector<256x256xf32> -> vector<256x256xf32>
    %c0_4 = arith.constant 0 : index
    %c0_5 = arith.constant 0 : index
    %10 = vector.load %arg11[%c0_4, %c0_5] : memref<256x1xf32, #tpu.memory_space<vmem>>, vector<256x1xf32>
    %cst_6 = arith.constant dense<0xFF800000> : vector<256xf32>
    %11 = vector.multi_reduction <maximumf>, %9, %cst_6 [1] : vector<256x256xf32> to vector<256xf32>
    %12 = vector.shape_cast %11 : vector<256xf32> to vector<256x1xf32>
    %13 = arith.maximumf %10, %12 : vector<256x1xf32>
    %14 = arith.subf %10, %13 : vector<256x1xf32>
    %15 = math.exp %14 : vector<256x1xf32>
    %16 = vector.broadcast %13 : vector<256x1xf32> to vector<256x256xf32>
    %17 = arith.subf %9, %16 : vector<256x256xf32>
    %18 = arith.truncf %17 : vector<256x256xf32> to vector<256x256xbf16>
    %19 = math.exp %18 : vector<256x256xbf16>
    %cst_7 = arith.constant dense<0.000000e+00> : vector<256x5xf32>
    %20 = tpu.matmul %19, %7, %cst_7 {dimension_numbers = #tpu.dot_dimension_numbers<[1], [1], [0], [0], [0, 0, 1, 0], [], []>} : vector<256x256xbf16>, vector<5x256xbf16>, vector<256x5xf32> -> vector<256x5xf32>
    %c0_8 = arith.constant 0 : index
    %c0_9 = arith.constant 0 : index
    %21 = vector.load %arg12[%c0_8, %c0_9] : memref<256x5xf32, #tpu.memory_space<vmem>>, vector<256x5xf32>
    %22 = vector.broadcast %15 : vector<256x1xf32> to vector<256x5xf32>
    %23 = arith.mulf %22, %21 : vector<256x5xf32>
    %24 = arith.addf %23, %20 : vector<256x5xf32>
    %c0_10 = arith.constant 0 : index
    %c0_11 = arith.constant 0 : index
    %25 = vector.load %arg12[%c0_10, %c0_11] : memref<256x5xf32, #tpu.memory_space<vmem>>, vector<256x5xf32>
    tpu.vector_store %arg12[%c0_10, %c0_11], %24 {strides = array<i32>} : memref<256x5xf32, #tpu.memory_space<vmem>>, vector<256x5xf32>,
    %c0_12 = arith.constant 0 : index
    %c0_13 = arith.constant 0 : index
    %26 = vector.load %arg11[%c0_12, %c0_13] : memref<256x1xf32, #tpu.memory_space<vmem>>, vector<256x1xf32>
    tpu.vector_store %arg11[%c0_12, %c0_13], %13 {strides = array<i32>} : memref<256x1xf32, #tpu.memory_space<vmem>>, vector<256x1xf32>,
    %c0_i32_14 = arith.constant 0 : i32
    %27 = arith.cmpi eq, %arg2, %c0_i32_14 : i32
    %28 = arith.extui %27 : i1 to i32
    %c0_i32_15 = arith.constant 0 : i32
    %29 = arith.cmpi ne, %28, %c0_i32_15 : i32
    scf.if %29 {
      %c0_16 = arith.constant 0 : index
      %c0_17 = arith.constant 0 : index
      %30 = vector.load %arg12[%c0_16, %c0_17] : memref<256x5xf32, #tpu.memory_space<vmem>>, vector<256x5xf32>
      %31 = vector.extract_strided_slice %30 {offsets = [0, 4], sizes = [256, 1], strides = [1, 1]} : vector<256x5xf32> to vector<256x1xf32>
      %32 = tpu.reciprocal %31 {approx = true} : vector<256x1xf32> -> vector<256x1xf32>
      %33 = vector.extract_strided_slice %30 {offsets = [0, 0], sizes = [256, 4], strides = [1, 1]} : vector<256x5xf32> to vector<256x4xf32>
      %34 = vector.broadcast %32 : vector<256x1xf32> to vector<256x4xf32>
      %35 = arith.mulf %33, %34 : vector<256x4xf32>
      %36 = arith.truncf %35 : vector<256x4xf32> to vector<256x4xbf16>
      %c0_18 = arith.constant 0 : index
      %c0_19 = arith.constant 0 : index
      %37 = vector.load %arg7[%c0_18, %c0_19] : memref<4x4xbf16, #tpu.memory_space<vmem>>, vector<4x4xbf16>
      %cst_20 = arith.constant dense<0.000000e+00> : vector<4x256xf32>
      %38 = tpu.matmul %37, %36, %cst_20 {dimension_numbers = #tpu.dot_dimension_numbers<[1], [1], [0], [0], [0, 0, 1, 0], [], []>} : vector<4x4xbf16>, vector<256x4xbf16>, vector<4x256xf32> -> vector<4x256xf32>
      %c0_21 = arith.constant 0 : index
      %c0_22 = arith.constant 0 : index
      %39 = vector.load %arg8[%c0_21, %c0_22] : memref<4x1xf32, #tpu.memory_space<vmem>>, vector<4x1xf32>
      %40 = vector.broadcast %39 : vector<4x1xf32> to vector<4x256xf32>
      %41 = arith.addf %38, %40 : vector<4x256xf32>
      %c0_23 = arith.constant 0 : index
      %c0_24 = arith.constant 0 : index
      %c0_25 = arith.constant 0 : index
      %42 = vector.load %arg9[%c0_23, %c0_24, %c0_25] : memref<1x4x256xf32, #tpu.memory_space<vmem>>, vector<1x4x256xf32>
      %43 = vector.shape_cast %42 : vector<1x4x256xf32> to vector<4x256xf32>
      %44 = vector.shape_cast %41 : vector<4x256xf32> to vector<1x4x256xf32>
      tpu.vector_store %arg9[%c0_23, %c0_24, %c0_25], %44 {strides = array<i32>} : memref<1x4x256xf32, #tpu.memory_space<vmem>>, vector<1x4x256xf32>,
    } else {
    }
    return
  }
  func.func @transform_0(%arg0: i32, %arg1: i32, %arg2: i32) -> (i32, i32, i32) {
    %c0_i32 = arith.constant 0 : i32
    %c0_i32_0 = arith.constant 0 : i32
    return %arg0, %arg1, %c0_i32 : i32, i32, i32
  }
  func.func @transform_1(%arg0: i32, %arg1: i32, %arg2: i32) -> (i32, i32, i32) {
    %c0_i32 = arith.constant 0 : i32
    %c0_i32_0 = arith.constant 0 : i32
    %c0_i32_1 = arith.constant 0 : i32
    return %arg0, %c0_i32, %c0_i32_0 : i32, i32, i32
  }
  func.func @transform_2(%arg0: i32, %arg1: i32, %arg2: i32) -> (i32, i32) {
    %c0_i32 = arith.constant 0 : i32
    %c0_i32_0 = arith.constant 0 : i32
    %c0_i32_1 = arith.constant 0 : i32
    return %c0_i32, %c0_i32_0 : i32, i32
  }
  func.func @transform_3(%arg0: i32, %arg1: i32, %arg2: i32) -> (i32, i32) {
    %c0_i32 = arith.constant 0 : i32
    %c0_i32_0 = arith.constant 0 : i32
    %c0_i32_1 = arith.constant 0 : i32
    return %c0_i32, %c0_i32_0 : i32, i32
  }
  func.func @transform_4(%arg0: i32, %arg1: i32, %arg2: i32) -> (i32, i32) {
    %c0_i32 = arith.constant 0 : i32
    %c0_i32_0 = arith.constant 0 : i32
    %c0_i32_1 = arith.constant 0 : i32
    return %c0_i32, %c0_i32_0 : i32, i32
  }
  func.func @transform_5(%arg0: i32, %arg1: i32, %arg2: i32) -> (i32, i32) {
    %c0_i32 = arith.constant 0 : i32
    %c0_i32_0 = arith.constant 0 : i32
    %c0_i32_1 = arith.constant 0 : i32
    return %c0_i32, %c0_i32_0 : i32, i32
  }
  func.func @transform_6(%arg0: i32, %arg1: i32, %arg2: i32) -> (i32, i32, i32) {
    %c0_i32 = arith.constant 0 : i32
    %c0_i32_0 = arith.constant 0 : i32
    return %arg0, %c0_i32, %arg1 : i32, i32, i32
  }
}

</mosaic_0001>

<llo_original>
// kernel: attention_slice_pallas.1
$region0: #{attention_slice_pallas.1}
  #allocation0 [shape = 'u32[]', space=smem, size = 0x4, offset = 0x4, fixed_abs, tag = 'smem constant byte address 0x4 - core index']
  #allocation1 [shape = 'u32[144,128]{1,0:T(1,128)}', space=vmem, size = 0x12000, scoped, tag = 'internal scratch']
  #allocation2 [shape = 'bf16[256,5]{1,0:T(8,128)(2,1)}', space=vmem, size = 0x10000, scoped, tag = 'scratch operand']
  #allocation3 [shape = 'f32[256,1]{1,0:T(8,128)}', space=vmem, size = 0x20000, scoped, tag = 'scratch operand']
  #allocation4 [shape = 'f32[256,5]{1,0:T(8,128)}', space=vmem, size = 0x20000, scoped, tag = 'scratch operand']
  %s0 = inlined_call_operand.vmem [shape: bf16[2,256,4], index: 0, kind: input, shape index: {}]
  %s1 = inlined_call_operand.vmem [shape: bf16[2,5,256], index: 1, kind: input, shape index: {}]
  %s2 = inlined_call_operand.vmem [shape: bf16[4,5], index: 2, kind: input, shape index: {}]
  %s3 = inlined_call_operand.vmem [shape: f32[1,5], index: 3, kind: input, shape index: {}]
  %s4 = inlined_call_operand.vmem [shape: bf16[4,4], index: 4, kind: input, shape index: {}]
  %s5 = inlined_call_operand.vmem [shape: f32[4,1], index: 5, kind: input, shape index: {}]
  %s6 = inlined_call_operand.vmem [shape: f32[2,4,256], index: 6, kind: output, shape index: {}]
  %s7 = sld [smem:[#allocation0]]
  $region65: #{attention_slice_pallas.1} parent=0
    _
  %s9 = ssub.s32 1, %s7
  %s10 = scalar_select 0, %s9, %s7
  loop: start=0, step=1, limit=4
  $region2: #{attention_slice_pallas.1} parent=0 // loop_pre_header
    _
  $region3: #{attention_slice_pallas.1} parent=0 // loop_header
    %s12 = sphi 0, %s16
    %p13 = scmp.ge.s32.totalorder %s12, 4
    %s19 = sphi 0, %s38
    %s20 = sphi 0, %s34
    %s21 = sphi 0, %s30
    %s22 = sphi 0, %s19
    %s23 = sphi 0, %s20
    %s24 = sphi 0, %s21
    %s25 = sphi 0, %s22
    %s26 = sphi 0, %s23
    %s27 = sphi 0, %s24
    %s43 = sphi 0, %s45
    %s46 = sphi 0, %s43
    %s47 = sphi 0, %s46
    %s63 = sphi 0, %s47
    %s69 = sphi 0, %s71
    %s72 = sphi 0, %s69
    %s73 = sphi 0, %s72
    %s89 = sphi 0, %s73
    %s93 = sphi 0, %s93
    %s95 = sphi 0, %s93
    %s96 = sphi 0, %s95
    %s110 = sphi 0, %s96
    %s114 = sphi 0, %s114
    %s116 = sphi 0, %s114
    %s117 = sphi 0, %s116
    %s131 = sphi 0, %s117
    %s135 = sphi 0, %s135
    %s137 = sphi 0, %s135
    %s138 = sphi 0, %s137
    %s152 = sphi 0, %s138
    %s156 = sphi 0, %s156
    %s158 = sphi 0, %s156
    %s159 = sphi 0, %s158
    %s173 = sphi 0, %s159
    %s181 = sphi 0, %s183
    %s184 = sphi 0, %s181
    %s185 = sphi 0, %s184
    %s201 = sphi 0, %s185
  $region4: #{attention_slice_pallas.1} parent=0 // loop_header_branch
    %15 = sbr.rel (%p13) target = $region8
  $region5: #{attention_slice_pallas.1} parent=0 // loop_body
    %s17 = ssub.s32 %s12, 1
    %s18 = ssub.s32 %s12, 2
    %s28 = sadd.s32 1, %s21
    %p29 = scmp.ge.s32.totalorder %s28, 1
    %s30 = scalar_select %p29, 0, %s28
    %s31 = sadd.s32 1, %s20
    %s32 = scalar_select %p29, %s31, %s20
    %p33 = scmp.ge.s32.totalorder %s32, 1
    %s34 = scalar_select %p33, 0, %s32
    %s35 = sadd.s32 1, %s19
    %s36 = scalar_select %p33, %s35, %s19
    %p37 = scmp.ge.s32.totalorder %s36, 2
    %s38 = scalar_select %p37, 0, %s36
    %s39 = ssub.s32 %s19, %s38
    %s40 = ssub.s32 %s20, %s34
    %s41 = sor.u32 %s39, %s40
    %p42 = scmp.eq.s32.totalorder %s41, 0
    %s44 = sadd.s32 %s43, 1
    %s45 = scalar_select %p42, %s43, %s44
    %p48 = pneg %p42
    %p49 = scmp.eq.s32.totalorder %s12, 1
    %p50 = por %p48, %p49
    %p51 = scmp.ne.s32.totalorder %s43, %s46
    %p52 = scmp.eq.s32.totalorder %s12, 0
    %p53 = por %p51, %p52
    %p54 = scmp.ne.s32.totalorder %s43, %s46
    %p55 = scmp.eq.s32.totalorder %s17, 1
    %p56 = por %p54, %p55
    %p57 = scmp.ne.s32.totalorder %s46, %s47
    %p58 = scmp.eq.s32.totalorder %s17, 0
    %p59 = por %p57, %p58
    %p60 = scmp.ne.s32.totalorder %s46, %s47
    %p61 = scmp.eq.s32.totalorder %s18, 1
    %p62 = por %p60, %p61
    %p64 = scmp.ne.s32.totalorder %s47, %s63
    %p65 = scmp.eq.s32.totalorder %s18, 0
    %p66 = por %p64, %p65
    %s67 = ssub.s32 %s19, %s38
    %p68 = scmp.eq.s32.totalorder %s67, 0
    %s70 = sadd.s32 %s69, 1
    %s71 = scalar_select %p68, %s69, %s70
    %p74 = pneg %p68
    %p75 = scmp.eq.s32.totalorder %s12, 1
    %p76 = por %p74, %p75
    %p77 = scmp.ne.s32.totalorder %s69, %s72
    %p78 = scmp.eq.s32.totalorder %s12, 0
    %p79 = por %p77, %p78
    %p80 = scmp.ne.s32.totalorder %s69, %s72
    %p81 = scmp.eq.s32.totalorder %s17, 1
    %p82 = por %p80, %p81
    %p83 = scmp.ne.s32.totalorder %s72, %s73
    %p84 = scmp.eq.s32.totalorder %s17, 0
    %p85 = por %p83, %p84
    %p86 = scmp.ne.s32.totalorder %s72, %s73
    %p87 = scmp.eq.s32.totalorder %s18, 1
    %p88 = por %p86, %p87
    %p90 = scmp.ne.s32.totalorder %s73, %s89
    %p91 = scmp.eq.s32.totalorder %s18, 0
    %p92 = por %p90, %p91
    %s94 = sadd.s32 %s93, 1
    %p97 = scmp.eq.s32.totalorder %s12, 1
    %p98 = scmp.ne.s32.totalorder %s93, %s95
    %p99 = scmp.eq.s32.totalorder %s12, 0
    %p100 = por %p98, %p99
    %p101 = scmp.ne.s32.totalorder %s93, %s95
    %p102 = scmp.eq.s32.totalorder %s17, 1
    %p103 = por %p101, %p102
    %p104 = scmp.ne.s32.totalorder %s95, %s96
    %p105 = scmp.eq.s32.totalorder %s17, 0
    %p106 = por %p104, %p105
    %p107 = scmp.ne.s32.totalorder %s95, %s96
    %p108 = scmp.eq.s32.totalorder %s18, 1
    %p109 = por %p107, %p108
    %p111 = scmp.ne.s32.totalorder %s96, %s110
    %p112 = scmp.eq.s32.totalorder %s18, 0
    %p113 = por %p111, %p112
    %s115 = sadd.s32 %s114, 1
    %p118 = scmp.eq.s32.totalorder %s12, 1
    %p119 = scmp.ne.s32.totalorder %s114, %s116
    %p120 = scmp.eq.s32.totalorder %s12, 0
    %p121 = por %p119, %p120
    %p122 = scmp.ne.s32.totalorder %s114, %s116
    %p123 = scmp.eq.s32.totalorder %s17, 1
    %p124 = por %p122, %p123
    %p125 = scmp.ne.s32.totalorder %s116, %s117
    %p126 = scmp.eq.s32.totalorder %s17, 0
    %p127 = por %p125, %p126
    %p128 = scmp.ne.s32.totalorder %s116, %s117
    %p129 = scmp.eq.s32.totalorder %s18, 1
    %p130 = por %p128, %p129
    %p132 = scmp.ne.s32.totalorder %s117, %s131
    %p133 = scmp.eq.s32.totalorder %s18, 0
    %p134 = por %p132, %p133
    %s136 = sadd.s32 %s135, 1
    %p139 = scmp.eq.s32.totalorder %s12, 1
    %p140 = scmp.ne.s32.totalorder %s135, %s137
    %p141 = scmp.eq.s32.totalorder %s12, 0
    %p142 = por %p140, %p141
    %p143 = scmp.ne.s32.totalorder %s135, %s137
    %p144 = scmp.eq.s32.totalorder %s17, 1
    %p145 = por %p143, %p144
    %p146 = scmp.ne.s32.totalorder %s137, %s138
    %p147 = scmp.eq.s32.totalorder %s17, 0
    %p148 = por %p146, %p147
    %p149 = scmp.ne.s32.totalorder %s137, %s138
    %p150 = scmp.eq.s32.totalorder %s18, 1
    %p151 = por %p149, %p150
    %p153 = scmp.ne.s32.totalorder %s138, %s152
    %p154 = scmp.eq.s32.totalorder %s18, 0
    %p155 = por %p153, %p154
    %s157 = sadd.s32 %s156, 1
    %p160 = scmp.eq.s32.totalorder %s12, 1
    %p161 = scmp.ne.s32.totalorder %s156, %s158
    %p162 = scmp.eq.s32.totalorder %s12, 0
    %p163 = por %p161, %p162
    %p164 = scmp.ne.s32.totalorder %s156, %s158
    %p165 = scmp.eq.s32.totalorder %s17, 1
    %p166 = por %p164, %p165
    %p167 = scmp.ne.s32.totalorder %s158, %s159
    %p168 = scmp.eq.s32.totalorder %s17, 0
    %p169 = por %p167, %p168
    %p170 = scmp.ne.s32.totalorder %s158, %s159
    %p171 = scmp.eq.s32.totalorder %s18, 1
    %p172 = por %p170, %p171
    %p174 = scmp.ne.s32.totalorder %s159, %s173
    %p175 = scmp.eq.s32.totalorder %s18, 0
    %p176 = por %p174, %p175
    %s177 = ssub.s32 %s19, %s38
    %s178 = ssub.s32 %s20, %s34
    %s179 = sor.u32 %s177, %s178
    %p180 = scmp.eq.s32.totalorder %s179, 0
    %s182 = sadd.s32 %s181, 1
    %s183 = scalar_select %p180, %s181, %s182
    %p186 = pneg %p180
    %p187 = scmp.eq.s32.totalorder %s12, 1
    %p188 = por %p186, %p187
    %p189 = scmp.ne.s32.totalorder %s181, %s184
    %p190 = scmp.eq.s32.totalorder %s12, 0
    %p191 = por %p189, %p190
    %p192 = scmp.ne.s32.totalorder %s181, %s184
    %p193 = scmp.eq.s32.totalorder %s17, 1
    %p194 = por %p192, %p193
    %p195 = scmp.ne.s32.totalorder %s184, %s185
    %p196 = scmp.eq.s32.totalorder %s17, 0
    %p197 = por %p195, %p196
    %p198 = scmp.ne.s32.totalorder %s184, %s185
    %p199 = scmp.eq.s32.totalorder %s18, 1
    %p200 = por %p198, %p199
    %p202 = scmp.ne.s32.totalorder %s185, %s201
    %p203 = scmp.eq.s32.totalorder %s18, 0
    %p204 = por %p202, %p203
    %p205 = scmp.le.s32.totalorder 1, %s12
    %p206 = scmp.lt.s32.totalorder %s12, 3
    %p207 = pnand %p205, %p206
    %p208 = pneg %p207
    // Predicated region
    $region9: #{attention_slice_pallas.1} parent=5 // pred_check
      _
    $region10: #{attention_slice_pallas.1} parent=5 // pred_check_branch
      %210 = sbr.rel (%p207) target = $region12
    $region11: #{attention_slice_pallas.1} parent=5 // pred_region
      %s211 = ssub.s32 %s12, 1
      // Predicated region
      $region13: #{attention_slice_pallas.1} parent=11 // pred_check
        %p212 = pneg %p106
      $region14: #{attention_slice_pallas.1} parent=11 // pred_check_branch
        %214 = sbr.rel (%p212) target = $region16
      $region15: #{attention_slice_pallas.1} parent=11 // pred_region
        _
      $region16: #{attention_slice_pallas.1} parent=11 // pred_fallthru
        _
      // Predicated region
      $region17: #{attention_slice_pallas.1} parent=11 // pred_check
        %p215 = pneg %p127
      $region18: #{attention_slice_pallas.1} parent=11 // pred_check_branch
        %217 = sbr.rel (%p215) target = $region20
      $region19: #{attention_slice_pallas.1} parent=11 // pred_region
        _
      $region20: #{attention_slice_pallas.1} parent=11 // pred_fallthru
        _
      // Predicated region
      $region21: #{attention_slice_pallas.1} parent=11 // pred_check
        %p218 = pneg %p148
      $region22: #{attention_slice_pallas.1} parent=11 // pred_check_branch
        %220 = sbr.rel (%p218) target = $region24
      $region23: #{attention_slice_pallas.1} parent=11 // pred_region
        _
      $region24: #{attention_slice_pallas.1} parent=11 // pred_fallthru
        _
      // Predicated region
      $region25: #{attention_slice_pallas.1} parent=11 // pred_check
        %p221 = pneg %p169
      $region26: #{attention_slice_pallas.1} parent=11 // pred_check_branch
        %223 = sbr.rel (%p221) target = $region28
      $region27: #{attention_slice_pallas.1} parent=11 // pred_region
        _
      $region28: #{attention_slice_pallas.1} parent=11 // pred_fallthru
        _
    $region12: #{attention_slice_pallas.1} parent=5 // pred_fallthru
      _
    %p224 = scmp.lt.s32.totalorder %s12, 2
    // Predicated region
    $region29: #{attention_slice_pallas.1} parent=5 // pred_check
      %p225 = pneg %p224
    $region30: #{attention_slice_pallas.1} parent=5 // pred_check_branch
      %227 = sbr.rel (%p225) target = $region32
    $region31: #{attention_slice_pallas.1} parent=5 // pred_region
      // Predicated region
      $region33: #{attention_slice_pallas.1} parent=31 // pred_check
        %p228 = pneg %p53
      $region34: #{attention_slice_pallas.1} parent=31 // pred_check_branch
        %230 = sbr.rel (%p228) target = $region36
      $region35: #{attention_slice_pallas.1} parent=31 // pred_region
        %s231 = smul.u32 32, %s20
        %p232 = scmp.lt.s32.totalorder %s19, 1
        %s233 = scalar_select %p232, %s19, 1
        %p234 = scmp.lt.s32.totalorder %s231, 31
        %s235 = scalar_select %p234, %s231, 31
        %s236 = smul.addr %s233, 32
        %s237 = sadd.s32 %s235, %s236
        %s238 = smul.addr %s237, 4
        %s239 = scalar_lea.vmem %s0, %s238
        %s240 = smul.u32 32, %s20
      $region36: #{attention_slice_pallas.1} parent=31 // pred_fallthru
        _
      // Predicated region
      $region37: #{attention_slice_pallas.1} parent=31 // pred_check
        %p241 = pneg %p79
      $region38: #{attention_slice_pallas.1} parent=31 // pred_check_branch
        %243 = sbr.rel (%p241) target = $region40
      $region39: #{attention_slice_pallas.1} parent=31 // pred_region
        %p244 = scmp.lt.s32.totalorder %s19, 1
        %s245 = scalar_select %p244, %s19, 1
        %s246 = smul.addr %s245, 2
        %s247 = smul.addr %s246, 4
        %s248 = scalar_lea.vmem %s1, %s247
      $region40: #{attention_slice_pallas.1} parent=31 // pred_fallthru
        _
    $region32: #{attention_slice_pallas.1} parent=5 // pred_fallthru
      _
    %p249 = scmp.le.s32.totalorder 1, %s12
    %p250 = scmp.lt.s32.totalorder %s12, 3
    %p251 = pnand %p249, %p250
    %p252 = pneg %p251
    // Predicated region
    $region41: #{attention_slice_pallas.1} parent=5 // pred_check
      _
    $region42: #{attention_slice_pallas.1} parent=5 // pred_check_branch
      %254 = sbr.rel (%p251) target = $region44
    $region43: #{attention_slice_pallas.1} parent=5 // pred_region
      %s255 = ssub.s32 %s12, 1
      %s256 = smul.u32 32, %s23
      %p257 = scmp.lt.s32.totalorder %s22, 1
      %s258 = scalar_select %p257, %s22, 1
      %p259 = scmp.lt.s32.totalorder %s256, 31
      %s260 = scalar_select %p259, %s256, 31
      %s261 = smul.addr %s258, 32
      %s262 = sadd.s32 %s260, %s261
      %s263 = smul.addr %s262, 4
      %s264 = scalar_lea.vmem %s0, %s263
      %p265 = pneg %p59
      %p266 = pneg %p56
      %p267 = scmp.lt.s32.totalorder %s22, 1
      %s268 = scalar_select %p267, %s22, 1
      %s269 = smul.addr %s268, 2
      %s270 = smul.addr %s269, 4
      %s271 = scalar_lea.vmem %s1, %s270
      %p272 = pneg %p85
      %p273 = pneg %p82
      %p274 = pneg %p106
      %p275 = pneg %p103
      %p276 = pneg %p127
      %p277 = pneg %p124
      %p278 = pneg %p148
      %p279 = pneg %p145
      %p280 = pneg %p169
      %p281 = pneg %p166
      %p282 = pneg %p197
      %p283 = pneg %p194
      %s284 = smul.u32 2, %s23
      %p285 = scmp.lt.s32.totalorder %s22, 1
      %s286 = scalar_select %p285, %s22, 1
      %p287 = scmp.lt.s32.totalorder %s284, 1
      %s288 = scalar_select %p287, %s284, 1
      %s289 = smul.addr %s286, 2
      %s290 = sadd.s32 %s288, %s289
      %s291 = smul.addr %s290, 4
      %s292 = scalar_lea.vmem %s6, %s291
      %s293 = smul.u32 32, %s23
      %p294 = scmp.lt.s32.totalorder %s22, 1
      %s295 = scalar_select %p294, %s22, 1
      %p296 = scmp.lt.s32.totalorder %s293, 31
      %s297 = scalar_select %p296, %s293, 31
      %s298 = smul.addr %s295, 32
      %s299 = sadd.s32 %s297, %s298
      %s300 = smul.addr %s299, 4
      %s301 = scalar_lea.vmem %s0, %s300
      %s302 = smul.u32 32, %s23
      %p303 = scmp.lt.s32.totalorder %s22, 1
      %s304 = scalar_select %p303, %s22, 1
      %s305 = smul.addr %s304, 2
      %s306 = smul.addr %s305, 4
      %s307 = scalar_lea.vmem %s1, %s306
      %s308 = smul.u32 2, %s23
      %p309 = scmp.lt.s32.totalorder %s22, 1
      %s310 = scalar_select %p309, %s22, 1
      %p311 = scmp.lt.s32.totalorder %s308, 1
      %s312 = scalar_select %p311, %s308, 1
      %s313 = smul.addr %s310, 2
      %s314 = sadd.s32 %s312, %s313
      %s315 = smul.addr %s314, 4
      %s316 = scalar_lea.vmem %s6, %s315
      %s317 = smul.u32 2, %s23
      %p319 = scmp.eq.s32.totalorder %s24, 0
      // Predicated region
      $region45: #{attention_slice_pallas.1} parent=43 // pred_check
        %p320 = pneg %p319
      $region46: #{attention_slice_pallas.1} parent=43 // pred_check_branch
        %322 = sbr.rel (%p320) target = $region48
      $region47: #{attention_slice_pallas.1} parent=43 // pred_region
        %v323 = vld [vmem:[%s301] sm:$0xf]
        %v324 = vld [vmem:[%s301 + $0x4] sm:$0xf]
        %v325 = vld [vmem:[%s301 + $0x8] sm:$0xf]
        %v326 = vld [vmem:[%s301 + $0xc] sm:$0xf]
        %v327 = vld [vmem:[%s301 + $0x10] sm:$0xf]
        %v328 = vld [vmem:[%s301 + $0x14] sm:$0xf]
        %v329 = vld [vmem:[%s301 + $0x18] sm:$0xf]
        %v330 = vld [vmem:[%s301 + $0x1c] sm:$0xf]
        %v331 = vld [vmem:[%s301 + $0x20] sm:$0xf]
        %v332 = vld [vmem:[%s301 + $0x24] sm:$0xf]
        %v333 = vld [vmem:[%s301 + $0x28] sm:$0xf]
        %v334 = vld [vmem:[%s301 + $0x2c] sm:$0xf]
        %v335 = vld [vmem:[%s301 + $0x30] sm:$0xf]
        %v336 = vld [vmem:[%s301 + $0x34] sm:$0xf]
        %v337 = vld [vmem:[%s301 + $0x38] sm:$0xf]
        %v338 = vld [vmem:[%s301 + $0x3c] sm:$0xf]
        %v339 = vld [vmem:[%s301 + $0x40] sm:$0xf]
        %v340 = vld [vmem:[%s301 + $0x44] sm:$0xf]
        %v341 = vld [vmem:[%s301 + $0x48] sm:$0xf]
        %v342 = vld [vmem:[%s301 + $0x4c] sm:$0xf]
        %v343 = vld [vmem:[%s301 + $0x50] sm:$0xf]
        %v344 = vld [vmem:[%s301 + $0x54] sm:$0xf]
        %v345 = vld [vmem:[%s301 + $0x58] sm:$0xf]
        %v346 = vld [vmem:[%s301 + $0x5c] sm:$0xf]
        %v347 = vld [vmem:[%s301 + $0x60] sm:$0xf]
        %v348 = vld [vmem:[%s301 + $0x64] sm:$0xf]
        %v349 = vld [vmem:[%s301 + $0x68] sm:$0xf]
        %v350 = vld [vmem:[%s301 + $0x6c] sm:$0xf]
        %v351 = vld [vmem:[%s301 + $0x70] sm:$0xf]
        %v352 = vld [vmem:[%s301 + $0x74] sm:$0xf]
        %v353 = vld [vmem:[%s301 + $0x78] sm:$0xf]
        %v354 = vld [vmem:[%s301 + $0x7c] sm:$0xf]
        %v355 = vld [vmem:[%s2] sm:$0x3]
        %v356 = vld [vmem:[%s3] sm:$0x1]
        %v358 = vlaneseq
        %v359 = vshrl.u32 %v358, 7
        %v360 = vsub.s32 0, %v359
        %v361 = vrot.slane %v356, %v360
        %v395 = vunpack.c.l.b16 %v323
        %v396 = vunpack.c.l.b16 %v324
        %v397 = vunpack.c.l.b16 %v325
        %v398 = vunpack.c.l.b16 %v326
        %v399 = vunpack.c.l.b16 %v327
        %v400 = vunpack.c.l.b16 %v328
        %v401 = vunpack.c.l.b16 %v329
        %v402 = vunpack.c.l.b16 %v330
        %v403 = vunpack.c.l.b16 %v331
        %v404 = vunpack.c.l.b16 %v332
        %v405 = vunpack.c.l.b16 %v333
        %v406 = vunpack.c.l.b16 %v334
        %v407 = vunpack.c.l.b16 %v335
        %v408 = vunpack.c.l.b16 %v336
        %v409 = vunpack.c.l.b16 %v337
        %v410 = vunpack.c.l.b16 %v338
        %v411 = vunpack.c.l.b16 %v339
        %v412 = vunpack.c.l.b16 %v340
        %v413 = vunpack.c.l.b16 %v341
        %v414 = vunpack.c.l.b16 %v342
        %v415 = vunpack.c.l.b16 %v343
        %v416 = vunpack.c.l.b16 %v344
        %v417 = vunpack.c.l.b16 %v345
        %v418 = vunpack.c.l.b16 %v346
        %v419 = vunpack.c.l.b16 %v347
        %v420 = vunpack.c.l.b16 %v348
        %v421 = vunpack.c.l.b16 %v349
        %v422 = vunpack.c.l.b16 %v350
        %v423 = vunpack.c.l.b16 %v351
        %v424 = vunpack.c.l.b16 %v352
        %v425 = vunpack.c.l.b16 %v353
        %v426 = vunpack.c.l.b16 %v354
        %v427 = vpack.c.b16 %v396, %v395
        %v428 = vpack.c.b16 %v398, %v397
        %v429 = vpack.c.b16 %v400, %v399
        %v430 = vpack.c.b16 %v402, %v401
        %v431 = vpack.c.b16 %v404, %v403
        %v432 = vpack.c.b16 %v406, %v405
        %v433 = vpack.c.b16 %v408, %v407
        %v434 = vpack.c.b16 %v410, %v409
        %v435 = vpack.c.b16 %v412, %v411
        %v436 = vpack.c.b16 %v414, %v413
        %v437 = vpack.c.b16 %v416, %v415
        %v438 = vpack.c.b16 %v418, %v417
        %v439 = vpack.c.b16 %v420, %v419
        %v440 = vpack.c.b16 %v422, %v421
        %v441 = vpack.c.b16 %v424, %v423
        %v442 = vpack.c.b16 %v426, %v425
        %vm443 = vcmask 31744
        %v445 = vsel %vm443, %v427, 0
        %v448 = vsel %vm443, %v428, 0
        %v451 = vsel %vm443, %v429, 0
        %v454 = vsel %vm443, %v430, 0
        %v457 = vsel %vm443, %v431, 0
        %v460 = vsel %vm443, %v432, 0
        %v463 = vsel %vm443, %v433, 0
        %v466 = vsel %vm443, %v434, 0
        %v469 = vsel %vm443, %v435, 0
        %v472 = vsel %vm443, %v436, 0
        %v475 = vsel %vm443, %v437, 0
        %v478 = vsel %vm443, %v438, 0
        %v481 = vsel %vm443, %v439, 0
        %v484 = vsel %vm443, %v440, 0
        %v487 = vsel %vm443, %v441, 0
        %v490 = vsel %vm443, %v442, 0
        %vm492 = vcmask 1041408
        %v494 = vsel %vm492, %v355, 0
        %496 = vmatprep.subr.bf16.mxu0 0
        %497 = vmatpush1.bf16.msra.mxu0 0
        %498 = vmatprep.subr.bf16.mxu0 0
        %499 = vmatpush1.bf16.msra.mxu0 0
        %500 = vmatprep.subr.bf16.mxu0 0
        %501 = vmatpush1.bf16.msra.mxu0 0
        %502 = vmatprep.subr.bf16.mxu0 0
        %503 = vmatpush1.bf16.msra.mxu0 0
        %504 = vmatprep.subr.bf16.mxu0 0
        %505 = vmatpush1.bf16.msra.mxu0 0
        %506 = vmatprep.subr.bf16.mxu0 0
        %507 = vmatpush1.bf16.msra.mxu0 0
        %508 = vmatprep.subr.bf16.mxu0 0
        %509 = vmatpush1.bf16.msra.mxu0 0
        %510 = vmatprep.subr.bf16.mxu0 0
        %511 = vmatpush1.bf16.msra.mxu0 %v494
        %512 = vmatprep.subr.bf16.mxu0 0
        %513 = vmatpush2.bf16.msra.mxu0 0
        %514 = vmatprep.subr.bf16.mxu0 0
        %515 = vmatpush2.bf16.msra.mxu0 0
        %516 = vmatprep.subr.bf16.mxu0 0
        %517 = vmatpush2.bf16.msra.mxu0 0
        %518 = vmatprep.subr.bf16.mxu0 0
        %519 = vmatpush2.bf16.msra.mxu0 0
        %520 = vmatprep.subr.bf16.mxu0 0
        %521 = vmatpush2.bf16.msra.mxu0 0
        %522 = vmatprep.subr.bf16.mxu0 0
        %523 = vmatpush2.bf16.msra.mxu0 0
        %524 = vmatprep.subr.bf16.mxu0 0
        %525 = vmatpush2.bf16.msra.mxu0 0
        %526 = vmatprep.subr.bf16.mxu0 0
        %527 = vmatpush2.bf16.msra.mxu0 0
        %528 = vmatprep.mubr.bf16.mxu0 0
        %529 = vmatmul.mubr.bf16.gmra.mxu0 %v445
        %v530 = vpop.f32.mrf.mxu0
        %v531 = vadd.f32 %v361, %v530
        %v532 = vpop.f32.mrf.mxu0
        %v533 = vpop.f32.mrf.mxu0
        %v534 = vadd.f32 %v361, %v533
        %v535 = vpop.f32.mrf.mxu0
        %536 = vmatprep.mubr.bf16.mxu0 0
        %537 = vmatmul.mubr.bf16.gmra.mxu0 %v448
        %v538 = vpop.f32.mrf.mxu0
        %v539 = vadd.f32 %v361, %v538
        %v540 = vpop.f32.mrf.mxu0
        %v541 = vpop.f32.mrf.mxu0
        %v542 = vadd.f32 %v361, %v541
        %v543 = vpop.f32.mrf.mxu0
        %544 = vmatprep.mubr.bf16.mxu0 0
        %545 = vmatmul.mubr.bf16.gmra.mxu0 %v451
        %v546 = vpop.f32.mrf.mxu0
        %v547 = vadd.f32 %v361, %v546
        %v548 = vpop.f32.mrf.mxu0
        %v549 = vpop.f32.mrf.mxu0
        %v550 = vadd.f32 %v361, %v549
        %v551 = vpop.f32.mrf.mxu0
        %552 = vmatprep.mubr.bf16.mxu0 0
        %553 = vmatmul.mubr.bf16.gmra.mxu0 %v454
        %v554 = vpop.f32.mrf.mxu0
        %v555 = vadd.f32 %v361, %v554
        %v556 = vpop.f32.mrf.mxu0
        %v557 = vpop.f32.mrf.mxu0
        %v558 = vadd.f32 %v361, %v557
        %v559 = vpop.f32.mrf.mxu0
        %560 = vmatprep.mubr.bf16.mxu0 0
        %561 = vmatmul.mubr.bf16.gmra.mxu0 %v457
        %v562 = vpop.f32.mrf.mxu0
        %v563 = vadd.f32 %v361, %v562
        %v564 = vpop.f32.mrf.mxu0
        %v565 = vpop.f32.mrf.mxu0
        %v566 = vadd.f32 %v361, %v565
        %v567 = vpop.f32.mrf.mxu0
        %568 = vmatprep.mubr.bf16.mxu0 0
        %569 = vmatmul.mubr.bf16.gmra.mxu0 %v460
        %v570 = vpop.f32.mrf.mxu0
        %v571 = vadd.f32 %v361, %v570
        %v572 = vpop.f32.mrf.mxu0
        %v573 = vpop.f32.mrf.mxu0
        %v574 = vadd.f32 %v361, %v573
        %v575 = vpop.f32.mrf.mxu0
        %576 = vmatprep.mubr.bf16.mxu0 0
        %577 = vmatmul.mubr.bf16.gmra.mxu0 %v463
        %v578 = vpop.f32.mrf.mxu0
        %v579 = vadd.f32 %v361, %v578
        %v580 = vpop.f32.mrf.mxu0
        %v581 = vpop.f32.mrf.mxu0
        %v582 = vadd.f32 %v361, %v581
        %v583 = vpop.f32.mrf.mxu0
        %584 = vmatprep.mubr.bf16.mxu0 0
        %585 = vmatmul.mubr.bf16.gmra.mxu0 %v466
        %v586 = vpop.f32.mrf.mxu0
        %v587 = vadd.f32 %v361, %v586
        %v588 = vpop.f32.mrf.mxu0
        %v589 = vpop.f32.mrf.mxu0
        %v590 = vadd.f32 %v361, %v589
        %v591 = vpop.f32.mrf.mxu0
        %592 = vmatprep.mubr.bf16.mxu0 0
        %593 = vmatmul.mubr.bf16.gmra.mxu0 %v469
        %v594 = vpop.f32.mrf.mxu0
        %v595 = vadd.f32 %v361, %v594
        %v596 = vpop.f32.mrf.mxu0
        %v597 = vpop.f32.mrf.mxu0
        %v598 = vadd.f32 %v361, %v597
        %v599 = vpop.f32.mrf.mxu0
        %600 = vmatprep.mubr.bf16.mxu0 0
        %601 = vmatmul.mubr.bf16.gmra.mxu0 %v472
        %v602 = vpop.f32.mrf.mxu0
        %v603 = vadd.f32 %v361, %v602
        %v604 = vpop.f32.mrf.mxu0
        %v605 = vpop.f32.mrf.mxu0
        %v606 = vadd.f32 %v361, %v605
        %v607 = vpop.f32.mrf.mxu0
        %608 = vmatprep.mubr.bf16.mxu0 0
        %609 = vmatmul.mubr.bf16.gmra.mxu0 %v475
        %v610 = vpop.f32.mrf.mxu0
        %v611 = vadd.f32 %v361, %v610
        %v612 = vpop.f32.mrf.mxu0
        %v613 = vpop.f32.mrf.mxu0
        %v614 = vadd.f32 %v361, %v613
        %v615 = vpop.f32.mrf.mxu0
        %616 = vmatprep.mubr.bf16.mxu0 0
        %617 = vmatmul.mubr.bf16.gmra.mxu0 %v478
        %v618 = vpop.f32.mrf.mxu0
        %v619 = vadd.f32 %v361, %v618
        %v620 = vpop.f32.mrf.mxu0
        %v621 = vpop.f32.mrf.mxu0
        %v622 = vadd.f32 %v361, %v621
        %v623 = vpop.f32.mrf.mxu0
        %624 = vmatprep.mubr.bf16.mxu0 0
        %625 = vmatmul.mubr.bf16.gmra.mxu0 %v481
        %v626 = vpop.f32.mrf.mxu0
        %v627 = vadd.f32 %v361, %v626
        %v628 = vpop.f32.mrf.mxu0
        %v629 = vpop.f32.mrf.mxu0
        %v630 = vadd.f32 %v361, %v629
        %v631 = vpop.f32.mrf.mxu0
        %632 = vmatprep.mubr.bf16.mxu0 0
        %633 = vmatmul.mubr.bf16.gmra.mxu0 %v484
        %v634 = vpop.f32.mrf.mxu0
        %v635 = vadd.f32 %v361, %v634
        %v636 = vpop.f32.mrf.mxu0
        %v637 = vpop.f32.mrf.mxu0
        %v638 = vadd.f32 %v361, %v637
        %v639 = vpop.f32.mrf.mxu0
        %640 = vmatprep.mubr.bf16.mxu0 0
        %641 = vmatmul.mubr.bf16.gmra.mxu0 %v487
        %v642 = vpop.f32.mrf.mxu0
        %v643 = vadd.f32 %v361, %v642
        %v644 = vpop.f32.mrf.mxu0
        %v645 = vpop.f32.mrf.mxu0
        %v646 = vadd.f32 %v361, %v645
        %v647 = vpop.f32.mrf.mxu0
        %648 = vmatprep.mubr.bf16.mxu0 0
        %649 = vmatmul.mubr.bf16.gmra.mxu0 %v490
        %v650 = vpop.f32.mrf.mxu0
        %v651 = vadd.f32 %v361, %v650
        %v652 = vpop.f32.mrf.mxu0
        %v653 = vpop.f32.mrf.mxu0
        %v654 = vadd.f32 %v361, %v653
        %v655 = vpop.f32.mrf.mxu0
        %656 = vdwg.mxu0
        %v657 = vpack.c.bf16 %v534, %v531
        %v658 = vpack.c.bf16 %v542, %v539
        %v659 = vpack.c.bf16 %v550, %v547
        %v660 = vpack.c.bf16 %v558, %v555
        %v661 = vpack.c.bf16 %v566, %v563
        %v662 = vpack.c.bf16 %v574, %v571
        %v663 = vpack.c.bf16 %v582, %v579
        %v664 = vpack.c.bf16 %v590, %v587
        %v665 = vpack.c.bf16 %v598, %v595
        %v666 = vpack.c.bf16 %v606, %v603
        %v667 = vpack.c.bf16 %v614, %v611
        %v668 = vpack.c.bf16 %v622, %v619
        %v669 = vpack.c.bf16 %v630, %v627
        %v670 = vpack.c.bf16 %v638, %v635
        %v671 = vpack.c.bf16 %v646, %v643
        %v672 = vpack.c.bf16 %v654, %v651
        %v689 = vunpack.c.l.b16 %v657
        %v690 = vunpack.c.h.b16 %v657
        %v691 = vunpack.c.l.b16 %v658
        %v692 = vunpack.c.h.b16 %v658
        %v693 = vunpack.c.l.b16 %v659
        %v694 = vunpack.c.h.b16 %v659
        %v695 = vunpack.c.l.b16 %v660
        %v696 = vunpack.c.h.b16 %v660
        %v697 = vunpack.c.l.b16 %v661
        %v698 = vunpack.c.h.b16 %v661
        %v699 = vunpack.c.l.b16 %v662
        %v700 = vunpack.c.h.b16 %v662
        %v701 = vunpack.c.l.b16 %v663
        %v702 = vunpack.c.h.b16 %v663
        %v703 = vunpack.c.l.b16 %v664
        %v704 = vunpack.c.h.b16 %v664
        %v705 = vunpack.c.l.b16 %v665
        %v706 = vunpack.c.h.b16 %v665
        %v707 = vunpack.c.l.b16 %v666
        %v708 = vunpack.c.h.b16 %v666
        %v709 = vunpack.c.l.b16 %v667
        %v710 = vunpack.c.h.b16 %v667
        %v711 = vunpack.c.l.b16 %v668
        %v712 = vunpack.c.h.b16 %v668
        %v713 = vunpack.c.l.b16 %v669
        %v714 = vunpack.c.h.b16 %v669
        %v715 = vunpack.c.l.b16 %v670
        %v716 = vunpack.c.h.b16 %v670
        %v717 = vunpack.c.l.b16 %v671
        %v718 = vunpack.c.h.b16 %v671
        %v719 = vunpack.c.l.b16 %v672
        %v720 = vunpack.c.h.b16 %v672
        %v721 = vpack.c.b16 %v689, %v689
        %v722 = vpack.c.b16 %v690, %v690
        %v723 = vpack.c.b16 %v691, %v691
        %v724 = vpack.c.b16 %v692, %v692
        %v725 = vpack.c.b16 %v693, %v693
        %v726 = vpack.c.b16 %v694, %v694
        %v727 = vpack.c.b16 %v695, %v695
        %v728 = vpack.c.b16 %v696, %v696
        %v729 = vpack.c.b16 %v697, %v697
        %v730 = vpack.c.b16 %v698, %v698
        %v731 = vpack.c.b16 %v699, %v699
        %v732 = vpack.c.b16 %v700, %v700
        %v733 = vpack.c.b16 %v701, %v701
        %v734 = vpack.c.b16 %v702, %v702
        %v735 = vpack.c.b16 %v703, %v703
        %v736 = vpack.c.b16 %v704, %v704
        %v737 = vpack.c.b16 %v705, %v705
        %v738 = vpack.c.b16 %v706, %v706
        %v739 = vpack.c.b16 %v707, %v707
        %v740 = vpack.c.b16 %v708, %v708
        %v741 = vpack.c.b16 %v709, %v709
        %v742 = vpack.c.b16 %v710, %v710
        %v743 = vpack.c.b16 %v711, %v711
        %v744 = vpack.c.b16 %v712, %v712
        %v745 = vpack.c.b16 %v713, %v713
        %v746 = vpack.c.b16 %v714, %v714
        %v747 = vpack.c.b16 %v715, %v715
        %v748 = vpack.c.b16 %v716, %v716
        %v749 = vpack.c.b16 %v717, %v717
        %v750 = vpack.c.b16 %v718, %v718
        %v751 = vpack.c.b16 %v719, %v719
        %v752 = vpack.c.b16 %v720, %v720
        %vm785 = vcmask 35840
        %786 = vst.msk [vmem:[#allocation2] sm:$0xf] %vm785, %v721
        %787 = vst.msk [vmem:[#allocation2 + $0x4] sm:$0xf] %vm785, %v722
        %788 = vst.msk [vmem:[#allocation2 + $0x8] sm:$0xf] %vm785, %v723
        %789 = vst.msk [vmem:[#allocation2 + $0xc] sm:$0xf] %vm785, %v724
        %790 = vst.msk [vmem:[#allocation2 + $0x10] sm:$0xf] %vm785, %v725
        %791 = vst.msk [vmem:[#allocation2 + $0x14] sm:$0xf] %vm785, %v726
        %792 = vst.msk [vmem:[#allocation2 + $0x18] sm:$0xf] %vm785, %v727
        %793 = vst.msk [vmem:[#allocation2 + $0x1c] sm:$0xf] %vm785, %v728
        %794 = vst.msk [vmem:[#allocation2 + $0x20] sm:$0xf] %vm785, %v729
        %795 = vst.msk [vmem:[#allocation2 + $0x24] sm:$0xf] %vm785, %v730
        %796 = vst.msk [vmem:[#allocation2 + $0x28] sm:$0xf] %vm785, %v731
        %797 = vst.msk [vmem:[#allocation2 + $0x2c] sm:$0xf] %vm785, %v732
        %798 = vst.msk [vmem:[#allocation2 + $0x30] sm:$0xf] %vm785, %v733
        %799 = vst.msk [vmem:[#allocation2 + $0x34] sm:$0xf] %vm785, %v734
        %800 = vst.msk [vmem:[#allocation2 + $0x38] sm:$0xf] %vm785, %v735
        %801 = vst.msk [vmem:[#allocation2 + $0x3c] sm:$0xf] %vm785, %v736
        %802 = vst.msk [vmem:[#allocation2 + $0x40] sm:$0xf] %vm785, %v737
        %803 = vst.msk [vmem:[#allocation2 + $0x44] sm:$0xf] %vm785, %v738
        %804 = vst.msk [vmem:[#allocation2 + $0x48] sm:$0xf] %vm785, %v739
        %805 = vst.msk [vmem:[#allocation2 + $0x4c] sm:$0xf] %vm785, %v740
        %806 = vst.msk [vmem:[#allocation2 + $0x50] sm:$0xf] %vm785, %v741
        %807 = vst.msk [vmem:[#allocation2 + $0x54] sm:$0xf] %vm785, %v742
        %808 = vst.msk [vmem:[#allocation2 + $0x58] sm:$0xf] %vm785, %v743
        %809 = vst.msk [vmem:[#allocation2 + $0x5c] sm:$0xf] %vm785, %v744
        %810 = vst.msk [vmem:[#allocation2 + $0x60] sm:$0xf] %vm785, %v745
        %811 = vst.msk [vmem:[#allocation2 + $0x64] sm:$0xf] %vm785, %v746
        %812 = vst.msk [vmem:[#allocation2 + $0x68] sm:$0xf] %vm785, %v747
        %813 = vst.msk [vmem:[#allocation2 + $0x6c] sm:$0xf] %vm785, %v748
        %814 = vst.msk [vmem:[#allocation2 + $0x70] sm:$0xf] %vm785, %v749
        %815 = vst.msk [vmem:[#allocation2 + $0x74] sm:$0xf] %vm785, %v750
        %816 = vst.msk [vmem:[#allocation2 + $0x78] sm:$0xf] %vm785, %v751
        %817 = vst.msk [vmem:[#allocation2 + $0x7c] sm:$0xf] %vm785, %v752
        %vm818 = vcmask 7168
        %819 = vst.msk [vmem:[#allocation3] sm:$0xff] %vm818, -inf
        %820 = vst.msk [vmem:[#allocation3 + $0x8] sm:$0xff] %vm818, -inf
        %821 = vst.msk [vmem:[#allocation3 + $0x10] sm:$0xff] %vm818, -inf
        %822 = vst.msk [vmem:[#allocation3 + $0x18] sm:$0xff] %vm818, -inf
        %823 = vst.msk [vmem:[#allocation3 + $0x20] sm:$0xff] %vm818, -inf
        %824 = vst.msk [vmem:[#allocation3 + $0x28] sm:$0xff] %vm818, -inf
        %825 = vst.msk [vmem:[#allocation3 + $0x30] sm:$0xff] %vm818, -inf
        %826 = vst.msk [vmem:[#allocation3 + $0x38] sm:$0xff] %vm818, -inf
        %827 = vst.msk [vmem:[#allocation3 + $0x40] sm:$0xff] %vm818, -inf
        %828 = vst.msk [vmem:[#allocation3 + $0x48] sm:$0xff] %vm818, -inf
        %829 = vst.msk [vmem:[#allocation3 + $0x50] sm:$0xff] %vm818, -inf
        %830 = vst.msk [vmem:[#allocation3 + $0x58] sm:$0xff] %vm818, -inf
        %831 = vst.msk [vmem:[#allocation3 + $0x60] sm:$0xff] %vm818, -inf
        %832 = vst.msk [vmem:[#allocation3 + $0x68] sm:$0xff] %vm818, -inf
        %833 = vst.msk [vmem:[#allocation3 + $0x70] sm:$0xff] %vm818, -inf
        %834 = vst.msk [vmem:[#allocation3 + $0x78] sm:$0xff] %vm818, -inf
        %835 = vst.msk [vmem:[#allocation3 + $0x80] sm:$0xff] %vm818, -inf
        %836 = vst.msk [vmem:[#allocation3 + $0x88] sm:$0xff] %vm818, -inf
        %837 = vst.msk [vmem:[#allocation3 + $0x90] sm:$0xff] %vm818, -inf
        %838 = vst.msk [vmem:[#allocation3 + $0x98] sm:$0xff] %vm818, -inf
        %839 = vst.msk [vmem:[#allocation3 + $0xa0] sm:$0xff] %vm818, -inf
        %840 = vst.msk [vmem:[#allocation3 + $0xa8] sm:$0xff] %vm818, -inf
        %841 = vst.msk [vmem:[#allocation3 + $0xb0] sm:$0xff] %vm818, -inf
        %842 = vst.msk [vmem:[#allocation3 + $0xb8] sm:$0xff] %vm818, -inf
        %843 = vst.msk [vmem:[#allocation3 + $0xc0] sm:$0xff] %vm818, -inf
        %844 = vst.msk [vmem:[#allocation3 + $0xc8] sm:$0xff] %vm818, -inf
        %845 = vst.msk [vmem:[#allocation3 + $0xd0] sm:$0xff] %vm818, -inf
        %846 = vst.msk [vmem:[#allocation3 + $0xd8] sm:$0xff] %vm818, -inf
        %847 = vst.msk [vmem:[#allocation3 + $0xe0] sm:$0xff] %vm818, -inf
        %848 = vst.msk [vmem:[#allocation3 + $0xe8] sm:$0xff] %vm818, -inf
        %849 = vst.msk [vmem:[#allocation3 + $0xf0] sm:$0xff] %vm818, -inf
        %850 = vst.msk [vmem:[#allocation3 + $0xf8] sm:$0xff] %vm818, -inf
        %vm851 = vcmask 39936
        %852 = vst.msk [vmem:[#allocation4] sm:$0xff] %vm851, 0.0
        %853 = vst.msk [vmem:[#allocation4 + $0x8] sm:$0xff] %vm851, 0.0
        %854 = vst.msk [vmem:[#allocation4 + $0x10] sm:$0xff] %vm851, 0.0
        %855 = vst.msk [vmem:[#allocation4 + $0x18] sm:$0xff] %vm851, 0.0
        %856 = vst.msk [vmem:[#allocation4 + $0x20] sm:$0xff] %vm851, 0.0
        %857 = vst.msk [vmem:[#allocation4 + $0x28] sm:$0xff] %vm851, 0.0
        %858 = vst.msk [vmem:[#allocation4 + $0x30] sm:$0xff] %vm851, 0.0
        %859 = vst.msk [vmem:[#allocation4 + $0x38] sm:$0xff] %vm851, 0.0
        %860 = vst.msk [vmem:[#allocation4 + $0x40] sm:$0xff] %vm851, 0.0
        %861 = vst.msk [vmem:[#allocation4 + $0x48] sm:$0xff] %vm851, 0.0
        %862 = vst.msk [vmem:[#allocation4 + $0x50] sm:$0xff] %vm851, 0.0
        %863 = vst.msk [vmem:[#allocation4 + $0x58] sm:$0xff] %vm851, 0.0
        %864 = vst.msk [vmem:[#allocation4 + $0x60] sm:$0xff] %vm851, 0.0
        %865 = vst.msk [vmem:[#allocation4 + $0x68] sm:$0xff] %vm851, 0.0
        %866 = vst.msk [vmem:[#allocation4 + $0x70] sm:$0xff] %vm851, 0.0
        %867 = vst.msk [vmem:[#allocation4 + $0x78] sm:$0xff] %vm851, 0.0
        %868 = vst.msk [vmem:[#allocation4 + $0x80] sm:$0xff] %vm851, 0.0
        %869 = vst.msk [vmem:[#allocation4 + $0x88] sm:$0xff] %vm851, 0.0
        %870 = vst.msk [vmem:[#allocation4 + $0x90] sm:$0xff] %vm851, 0.0
        %871 = vst.msk [vmem:[#allocation4 + $0x98] sm:$0xff] %vm851, 0.0
        %872 = vst.msk [vmem:[#allocation4 + $0xa0] sm:$0xff] %vm851, 0.0
        %873 = vst.msk [vmem:[#allocation4 + $0xa8] sm:$0xff] %vm851, 0.0
        %874 = vst.msk [vmem:[#allocation4 + $0xb0] sm:$0xff] %vm851, 0.0
        %875 = vst.msk [vmem:[#allocation4 + $0xb8] sm:$0xff] %vm851, 0.0
        %876 = vst.msk [vmem:[#allocation4 + $0xc0] sm:$0xff] %vm851, 0.0
        %877 = vst.msk [vmem:[#allocation4 + $0xc8] sm:$0xff] %vm851, 0.0
        %878 = vst.msk [vmem:[#allocation4 + $0xd0] sm:$0xff] %vm851, 0.0
        %879 = vst.msk [vmem:[#allocation4 + $0xd8] sm:$0xff] %vm851, 0.0
        %880 = vst.msk [vmem:[#allocation4 + $0xe0] sm:$0xff] %vm851, 0.0
        %881 = vst.msk [vmem:[#allocation4 + $0xe8] sm:$0xff] %vm851, 0.0
        %882 = vst.msk [vmem:[#allocation4 + $0xf0] sm:$0xff] %vm851, 0.0
        %883 = vst.msk [vmem:[#allocation4 + $0xf8] sm:$0xff] %vm851, 0.0
      $region48: #{attention_slice_pallas.1} parent=43 // pred_fallthru
        _
      %s884 = smul.u32 %s24, 256
      %s885 = sshra.s32 %s884, 7
      %s886 = sand.u32 %s884, 127
      %s887 = smul.addr %s885, 4
      %s888 = scalar_lea.vmem %s307, %s887
      %v889 = vld [vmem:[%s888] sm:$0x77]
      %v890 = vld [vmem:[#allocation2] sm:$0xf]
      %v891 = vld [vmem:[#allocation2 + $0x4] sm:$0xf]
      %v892 = vld [vmem:[#allocation2 + $0x8] sm:$0xf]
      %v893 = vld [vmem:[#allocation2 + $0xc] sm:$0xf]
      %v894 = vld [vmem:[#allocation2 + $0x10] sm:$0xf]
      %v895 = vld [vmem:[#allocation2 + $0x14] sm:$0xf]
      %v896 = vld [vmem:[#allocation2 + $0x18] sm:$0xf]
      %v897 = vld [vmem:[#allocation2 + $0x1c] sm:$0xf]
      %v898 = vld [vmem:[#allocation2 + $0x20] sm:$0xf]
      %v899 = vld [vmem:[#allocation2 + $0x24] sm:$0xf]
      %v900 = vld [vmem:[#allocation2 + $0x28] sm:$0xf]
      %v901 = vld [vmem:[#allocation2 + $0x2c] sm:$0xf]
      %v902 = vld [vmem:[#allocation2 + $0x30] sm:$0xf]
      %v903 = vld [vmem:[#allocation2 + $0x34] sm:$0xf]
      %v904 = vld [vmem:[#allocation2 + $0x38] sm:$0xf]
      %v905 = vld [vmem:[#allocation2 + $0x3c] sm:$0xf]
      %v906 = vld [vmem:[#allocation2 + $0x40] sm:$0xf]
      %v907 = vld [vmem:[#allocation2 + $0x44] sm:$0xf]
      %v908 = vld [vmem:[#allocation2 + $0x48] sm:$0xf]
      %v909 = vld [vmem:[#allocation2 + $0x4c] sm:$0xf]
      %v910 = vld [vmem:[#allocation2 + $0x50] sm:$0xf]
      %v911 = vld [vmem:[#allocation2 + $0x54] sm:$0xf]
      %v912 = vld [vmem:[#allocation2 + $0x58] sm:$0xf]
      %v913 = vld [vmem:[#allocation2 + $0x5c] sm:$0xf]
      %v914 = vld [vmem:[#allocation2 + $0x60] sm:$0xf]
      %v915 = vld [vmem:[#allocation2 + $0x64] sm:$0xf]
      %v916 = vld [vmem:[#allocation2 + $0x68] sm:$0xf]
      %v917 = vld [vmem:[#allocation2 + $0x6c] sm:$0xf]
      %v918 = vld [vmem:[#allocation2 + $0x70] sm:$0xf]
      %v919 = vld [vmem:[#allocation2 + $0x74] sm:$0xf]
      %v920 = vld [vmem:[#allocation2 + $0x78] sm:$0xf]
      %v921 = vld [vmem:[#allocation2 + $0x7c] sm:$0xf]
      %v954 = vunpack.c.l.b16 %v890
      %v955 = vunpack.c.l.b16 %v891
      %v956 = vunpack.c.l.b16 %v892
      %v957 = vunpack.c.l.b16 %v893
      %v958 = vunpack.c.l.b16 %v894
      %v959 = vunpack.c.l.b16 %v895
      %v960 = vunpack.c.l.b16 %v896
      %v961 = vunpack.c.l.b16 %v897
      %v962 = vunpack.c.l.b16 %v898
      %v963 = vunpack.c.l.b16 %v899
      %v964 = vunpack.c.l.b16 %v900
      %v965 = vunpack.c.l.b16 %v901
      %v966 = vunpack.c.l.b16 %v902
      %v967 = vunpack.c.l.b16 %v903
      %v968 = vunpack.c.l.b16 %v904
      %v969 = vunpack.c.l.b16 %v905
      %v970 = vunpack.c.l.b16 %v906
      %v971 = vunpack.c.l.b16 %v907
      %v972 = vunpack.c.l.b16 %v908
      %v973 = vunpack.c.l.b16 %v909
      %v974 = vunpack.c.l.b16 %v910
      %v975 = vunpack.c.l.b16 %v911
      %v976 = vunpack.c.l.b16 %v912
      %v977 = vunpack.c.l.b16 %v913
      %v978 = vunpack.c.l.b16 %v914
      %v979 = vunpack.c.l.b16 %v915
      %v980 = vunpack.c.l.b16 %v916
      %v981 = vunpack.c.l.b16 %v917
      %v982 = vunpack.c.l.b16 %v918
      %v983 = vunpack.c.l.b16 %v919
      %v984 = vunpack.c.l.b16 %v920
      %v985 = vunpack.c.l.b16 %v921
      %v986 = vpack.c.b16 %v955, %v954
      %v987 = vpack.c.b16 %v957, %v956
      %v988 = vpack.c.b16 %v959, %v958
      %v989 = vpack.c.b16 %v961, %v960
      %v990 = vpack.c.b16 %v963, %v962
      %v991 = vpack.c.b16 %v965, %v964
      %v992 = vpack.c.b16 %v967, %v966
      %v993 = vpack.c.b16 %v969, %v968
      %v994 = vpack.c.b16 %v971, %v970
      %v995 = vpack.c.b16 %v973, %v972
      %v996 = vpack.c.b16 %v975, %v974
      %v997 = vpack.c.b16 %v977, %v976
      %v998 = vpack.c.b16 %v979, %v978
      %v999 = vpack.c.b16 %v981, %v980
      %v1000 = vpack.c.b16 %v983, %v982
      %v1001 = vpack.c.b16 %v985, %v984
      %v1003 = vunpack.c.l.b16 %v889
      %v1004 = vunpack.c.h.b16 %v889
      %v1005 = vpack.c.b16 %v1003, %v1003
      %v1006 = vpack.c.b16 %v1004, %v1004
      %vm1007 = vcmask 39936
      %v1009 = vsel %vm1007, %v986, 0
      %v1012 = vsel %vm1007, %v987, 0
      %v1015 = vsel %vm1007, %v988, 0
      %v1018 = vsel %vm1007, %v989, 0
      %v1021 = vsel %vm1007, %v990, 0
      %v1024 = vsel %vm1007, %v991, 0
      %v1027 = vsel %vm1007, %v992, 0
      %v1030 = vsel %vm1007, %v993, 0
      %v1033 = vsel %vm1007, %v994, 0
      %v1036 = vsel %vm1007, %v995, 0
      %v1039 = vsel %vm1007, %v996, 0
      %v1042 = vsel %vm1007, %v997, 0
      %v1045 = vsel %vm1007, %v998, 0
      %v1048 = vsel %vm1007, %v999, 0
      %v1051 = vsel %vm1007, %v1000, 0
      %v1054 = vsel %vm1007, %v1001, 0
      %vm1056 = vcmask 1041408
      %vm1057 = vcmask 1042432
      %v1058 = vsel %vm1056, 4294967295, 65535
      %v1059 = vsel %vm1057, %v1058, 0
      %v1061 = vand.u32 %v1005, %v1059
      %v1064 = vand.u32 %v1006, %v1059
      %1066 = vmatprep.subr.bf16.mxu0 0
      %1067 = vmatpush1.bf16.msra.mxu0 0
      %1068 = vmatprep.subr.bf16.mxu0 0
      %1069 = vmatpush1.bf16.msra.mxu0 0
      %1070 = vmatprep.subr.bf16.mxu0 0
      %1071 = vmatpush1.bf16.msra.mxu0 0
      %1072 = vmatprep.subr.bf16.mxu0 0
      %1073 = vmatpush1.bf16.msra.mxu0 0
      %1074 = vmatprep.subr.bf16.mxu0 0
      %1075 = vmatpush1.bf16.msra.mxu0 0
      %1076 = vmatprep.subr.bf16.mxu0 0
      %1077 = vmatpush1.bf16.msra.mxu0 0
      %1078 = vmatprep.subr.bf16.mxu0 0
      %1079 = vmatpush1.bf16.msra.mxu0 0
      %1080 = vmatprep.subr.bf16.mxu0 %v1064
      %1081 = vmatpush1.bf16.msra.mxu0 %v1061
      %1082 = vmatprep.subr.bf16.mxu0 0
      %1083 = vmatpush2.bf16.msra.mxu0 0
      %1084 = vmatprep.subr.bf16.mxu0 0
      %1085 = vmatpush2.bf16.msra.mxu0 0
      %1086 = vmatprep.subr.bf16.mxu0 0
      %1087 = vmatpush2.bf16.msra.mxu0 0
      %1088 = vmatprep.subr.bf16.mxu0 0
      %1089 = vmatpush2.bf16.msra.mxu0 0
      %1090 = vmatprep.subr.bf16.mxu0 0
      %1091 = vmatpush2.bf16.msra.mxu0 0
      %1092 = vmatprep.subr.bf16.mxu0 0
      %1093 = vmatpush2.bf16.msra.mxu0 0
      %1094 = vmatprep.subr.bf16.mxu0 0
      %1095 = vmatpush2.bf16.msra.mxu0 0
      %1096 = vmatprep.subr.bf16.mxu0 0
      %1097 = vmatpush2.bf16.msra.mxu0 0
      %1098 = vmatprep.mubr.bf16.mxu0 0
      %1099 = vmatmul.mubr.bf16.gmra.mxu0 %v1009
      %v1100 = vpop.f32.mrf.mxu0
      %v1101 = vadd.f32 0.0, %v1100
      %v1102 = vpop.f32.mrf.mxu0
      %v1103 = vadd.f32 0.0, %v1102
      %v1104 = vpop.f32.mrf.mxu0
      %v1105 = vadd.f32 0.0, %v1104
      %v1106 = vpop.f32.mrf.mxu0
      %v1107 = vadd.f32 0.0, %v1106
      %1108 = vmatprep.mubr.bf16.mxu0 0
      %1109 = vmatmul.mubr.bf16.gmra.mxu0 %v1012
      %v1110 = vpop.f32.mrf.mxu0
      %v1111 = vadd.f32 0.0, %v1110
      %v1112 = vpop.f32.mrf.mxu0
      %v1113 = vadd.f32 0.0, %v1112
      %v1114 = vpop.f32.mrf.mxu0
      %v1115 = vadd.f32 0.0, %v1114
      %v1116 = vpop.f32.mrf.mxu0
      %v1117 = vadd.f32 0.0, %v1116
      %1118 = vmatprep.mubr.bf16.mxu0 0
      %1119 = vmatmul.mubr.bf16.gmra.mxu0 %v1015
      %v1120 = vpop.f32.mrf.mxu0
      %v1121 = vadd.f32 0.0, %v1120
      %v1122 = vpop.f32.mrf.mxu0
      %v1123 = vadd.f32 0.0, %v1122
      %v1124 = vpop.f32.mrf.mxu0
      %v1125 = vadd.f32 0.0, %v1124
      %v1126 = vpop.f32.mrf.mxu0
      %v1127 = vadd.f32 0.0, %v1126
      %1128 = vmatprep.mubr.bf16.mxu0 0
      %1129 = vmatmul.mubr.bf16.gmra.mxu0 %v1018
      %v1130 = vpop.f32.mrf.mxu0
      %v1131 = vadd.f32 0.0, %v1130
      %v1132 = vpop.f32.mrf.mxu0
      %v1133 = vadd.f32 0.0, %v1132
      %v1134 = vpop.f32.mrf.mxu0
      %v1135 = vadd.f32 0.0, %v1134
      %v1136 = vpop.f32.mrf.mxu0
      %v1137 = vadd.f32 0.0, %v1136
      %1138 = vmatprep.mubr.bf16.mxu0 0
      %1139 = vmatmul.mubr.bf16.gmra.mxu0 %v1021
      %v1140 = vpop.f32.mrf.mxu0
      %v1141 = vadd.f32 0.0, %v1140
      %v1142 = vpop.f32.mrf.mxu0
      %v1143 = vadd.f32 0.0, %v1142
      %v1144 = vpop.f32.mrf.mxu0
      %v1145 = vadd.f32 0.0, %v1144
      %v1146 = vpop.f32.mrf.mxu0
      %v1147 = vadd.f32 0.0, %v1146
      %1148 = vmatprep.mubr.bf16.mxu0 0
      %1149 = vmatmul.mubr.bf16.gmra.mxu0 %v1024
      %v1150 = vpop.f32.mrf.mxu0
      %v1151 = vadd.f32 0.0, %v1150
      %v1152 = vpop.f32.mrf.mxu0
      %v1153 = vadd.f32 0.0, %v1152
      %v1154 = vpop.f32.mrf.mxu0
      %v1155 = vadd.f32 0.0, %v1154
      %v1156 = vpop.f32.mrf.mxu0
      %v1157 = vadd.f32 0.0, %v1156
      %1158 = vmatprep.mubr.bf16.mxu0 0
      %1159 = vmatmul.mubr.bf16.gmra.mxu0 %v1027
      %v1160 = vpop.f32.mrf.mxu0
      %v1161 = vadd.f32 0.0, %v1160
      %v1162 = vpop.f32.mrf.mxu0
      %v1163 = vadd.f32 0.0, %v1162
      %v1164 = vpop.f32.mrf.mxu0
      %v1165 = vadd.f32 0.0, %v1164
      %v1166 = vpop.f32.mrf.mxu0
      %v1167 = vadd.f32 0.0, %v1166
      %1168 = vmatprep.mubr.bf16.mxu0 0
      %1169 = vmatmul.mubr.bf16.gmra.mxu0 %v1030
      %v1170 = vpop.f32.mrf.mxu0
      %v1171 = vadd.f32 0.0, %v1170
      %v1172 = vpop.f32.mrf.mxu0
      %v1173 = vadd.f32 0.0, %v1172
      %v1174 = vpop.f32.mrf.mxu0
      %v1175 = vadd.f32 0.0, %v1174
      %v1176 = vpop.f32.mrf.mxu0
      %v1177 = vadd.f32 0.0, %v1176
      %1178 = vmatprep.mubr.bf16.mxu0 0
      %1179 = vmatmul.mubr.bf16.gmra.mxu0 %v1033
      %v1180 = vpop.f32.mrf.mxu0
      %v1181 = vadd.f32 0.0, %v1180
      %v1182 = vpop.f32.mrf.mxu0
      %v1183 = vadd.f32 0.0, %v1182
      %v1184 = vpop.f32.mrf.mxu0
      %v1185 = vadd.f32 0.0, %v1184
      %v1186 = vpop.f32.mrf.mxu0
      %v1187 = vadd.f32 0.0, %v1186
      %1188 = vmatprep.mubr.bf16.mxu0 0
      %1189 = vmatmul.mubr.bf16.gmra.mxu0 %v1036
      %v1190 = vpop.f32.mrf.mxu0
      %v1191 = vadd.f32 0.0, %v1190
      %v1192 = vpop.f32.mrf.mxu0
      %v1193 = vadd.f32 0.0, %v1192
      %v1194 = vpop.f32.mrf.mxu0
      %v1195 = vadd.f32 0.0, %v1194
      %v1196 = vpop.f32.mrf.mxu0
      %v1197 = vadd.f32 0.0, %v1196
      %1198 = vmatprep.mubr.bf16.mxu0 0
      %1199 = vmatmul.mubr.bf16.gmra.mxu0 %v1039
      %v1200 = vpop.f32.mrf.mxu0
      %v1201 = vadd.f32 0.0, %v1200
      %v1202 = vpop.f32.mrf.mxu0
      %v1203 = vadd.f32 0.0, %v1202
      %v1204 = vpop.f32.mrf.mxu0
      %v1205 = vadd.f32 0.0, %v1204
      %v1206 = vpop.f32.mrf.mxu0
      %v1207 = vadd.f32 0.0, %v1206
      %1208 = vmatprep.mubr.bf16.mxu0 0
      %1209 = vmatmul.mubr.bf16.gmra.mxu0 %v1042
      %v1210 = vpop.f32.mrf.mxu0
      %v1211 = vadd.f32 0.0, %v1210
      %v1212 = vpop.f32.mrf.mxu0
      %v1213 = vadd.f32 0.0, %v1212
      %v1214 = vpop.f32.mrf.mxu0
      %v1215 = vadd.f32 0.0, %v1214
      %v1216 = vpop.f32.mrf.mxu0
      %v1217 = vadd.f32 0.0, %v1216
      %1218 = vmatprep.mubr.bf16.mxu0 0
      %1219 = vmatmul.mubr.bf16.gmra.mxu0 %v1045
      %v1220 = vpop.f32.mrf.mxu0
      %v1221 = vadd.f32 0.0, %v1220
      %v1222 = vpop.f32.mrf.mxu0
      %v1223 = vadd.f32 0.0, %v1222
      %v1224 = vpop.f32.mrf.mxu0
      %v1225 = vadd.f32 0.0, %v1224
      %v1226 = vpop.f32.mrf.mxu0
      %v1227 = vadd.f32 0.0, %v1226
      %1228 = vmatprep.mubr.bf16.mxu0 0
      %1229 = vmatmul.mubr.bf16.gmra.mxu0 %v1048
      %v1230 = vpop.f32.mrf.mxu0
      %v1231 = vadd.f32 0.0, %v1230
      %v1232 = vpop.f32.mrf.mxu0
      %v1233 = vadd.f32 0.0, %v1232
      %v1234 = vpop.f32.mrf.mxu0
      %v1235 = vadd.f32 0.0, %v1234
      %v1236 = vpop.f32.mrf.mxu0
      %v1237 = vadd.f32 0.0, %v1236
      %1238 = vmatprep.mubr.bf16.mxu0 0
      %1239 = vmatmul.mubr.bf16.gmra.mxu0 %v1051
      %v1240 = vpop.f32.mrf.mxu0
      %v1241 = vadd.f32 0.0, %v1240
      %v1242 = vpop.f32.mrf.mxu0
      %v1243 = vadd.f32 0.0, %v1242
      %v1244 = vpop.f32.mrf.mxu0
      %v1245 = vadd.f32 0.0, %v1244
      %v1246 = vpop.f32.mrf.mxu0
      %v1247 = vadd.f32 0.0, %v1246
      %1248 = vmatprep.mubr.bf16.mxu0 0
      %1249 = vmatmul.mubr.bf16.gmra.mxu0 %v1054
      %v1250 = vpop.f32.mrf.mxu0
      %v1251 = vadd.f32 0.0, %v1250
      %v1252 = vpop.f32.mrf.mxu0
      %v1253 = vadd.f32 0.0, %v1252
      %v1254 = vpop.f32.mrf.mxu0
      %v1255 = vadd.f32 0.0, %v1254
      %v1256 = vpop.f32.mrf.mxu0
      %v1257 = vadd.f32 0.0, %v1256
      %1258 = vdwg.mxu0
      %v1259 = vld [vmem:[#allocation3] sm:$0xff]
      %v1260 = vld [vmem:[#allocation3 + $0x8] sm:$0xff]
      %v1261 = vld [vmem:[#allocation3 + $0x10] sm:$0xff]
      %v1262 = vld [vmem:[#allocation3 + $0x18] sm:$0xff]
      %v1263 = vld [vmem:[#allocation3 + $0x20] sm:$0xff]
      %v1264 = vld [vmem:[#allocation3 + $0x28] sm:$0xff]
      %v1265 = vld [vmem:[#allocation3 + $0x30] sm:$0xff]
      %v1266 = vld [vmem:[#allocation3 + $0x38] sm:$0xff]
      %v1267 = vld [vmem:[#allocation3 + $0x40] sm:$0xff]
      %v1268 = vld [vmem:[#allocation3 + $0x48] sm:$0xff]
      %v1269 = vld [vmem:[#allocation3 + $0x50] sm:$0xff]
      %v1270 = vld [vmem:[#allocation3 + $0x58] sm:$0xff]
      %v1271 = vld [vmem:[#allocation3 + $0x60] sm:$0xff]
      %v1272 = vld [vmem:[#allocation3 + $0x68] sm:$0xff]
      %v1273 = vld [vmem:[#allocation3 + $0x70] sm:$0xff]
      %v1274 = vld [vmem:[#allocation3 + $0x78] sm:$0xff]
      %v1275 = vld [vmem:[#allocation3 + $0x80] sm:$0xff]
      %v1276 = vld [vmem:[#allocation3 + $0x88] sm:$0xff]
      %v1277 = vld [vmem:[#allocation3 + $0x90] sm:$0xff]
      %v1278 = vld [vmem:[#allocation3 + $0x98] sm:$0xff]
      %v1279 = vld [vmem:[#allocation3 + $0xa0] sm:$0xff]
      %v1280 = vld [vmem:[#allocation3 + $0xa8] sm:$0xff]
      %v1281 = vld [vmem:[#allocation3 + $0xb0] sm:$0xff]
      %v1282 = vld [vmem:[#allocation3 + $0xb8] sm:$0xff]
      %v1283 = vld [vmem:[#allocation3 + $0xc0] sm:$0xff]
      %v1284 = vld [vmem:[#allocation3 + $0xc8] sm:$0xff]
      %v1285 = vld [vmem:[#allocation3 + $0xd0] sm:$0xff]
      %v1286 = vld [vmem:[#allocation3 + $0xd8] sm:$0xff]
      %v1287 = vld [vmem:[#allocation3 + $0xe0] sm:$0xff]
      %v1288 = vld [vmem:[#allocation3 + $0xe8] sm:$0xff]
      %v1289 = vld [vmem:[#allocation3 + $0xf0] sm:$0xff]
      %v1290 = vld [vmem:[#allocation3 + $0xf8] sm:$0xff]
      %v1291 = vmax.f32 %v1101, %v1103
      %1292 = vmax.xlane.f32.xlu0 %v1291
      %v1293 = vpop.xlane.xlu0 %1292
      %v1294 = vmax.f32 %v1105, %v1107
      %1295 = vmax.xlane.f32.xlu0 %v1294
      %v1296 = vpop.xlane.xlu0 %1295
      %v1297 = vmax.f32 %v1111, %v1113
      %1298 = vmax.xlane.f32.xlu0 %v1297
      %v1299 = vpop.xlane.xlu0 %1298
      %v1300 = vmax.f32 %v1115, %v1117
      %1301 = vmax.xlane.f32.xlu0 %v1300
      %v1302 = vpop.xlane.xlu0 %1301
      %v1303 = vmax.f32 %v1121, %v1123
      %1304 = vmax.xlane.f32.xlu0 %v1303
      %v1305 = vpop.xlane.xlu0 %1304
      %v1306 = vmax.f32 %v1125, %v1127
      %1307 = vmax.xlane.f32.xlu0 %v1306
      %v1308 = vpop.xlane.xlu0 %1307
      %v1309 = vmax.f32 %v1131, %v1133
      %1310 = vmax.xlane.f32.xlu0 %v1309
      %v1311 = vpop.xlane.xlu0 %1310
      %v1312 = vmax.f32 %v1135, %v1137
      %1313 = vmax.xlane.f32.xlu0 %v1312
      %v1314 = vpop.xlane.xlu0 %1313
      %v1315 = vmax.f32 %v1141, %v1143
      %1316 = vmax.xlane.f32.xlu0 %v1315
      %v1317 = vpop.xlane.xlu0 %1316
      %v1318 = vmax.f32 %v1145, %v1147
      %1319 = vmax.xlane.f32.xlu0 %v1318
      %v1320 = vpop.xlane.xlu0 %1319
      %v1321 = vmax.f32 %v1151, %v1153
      %1322 = vmax.xlane.f32.xlu0 %v1321
      %v1323 = vpop.xlane.xlu0 %1322
      %v1324 = vmax.f32 %v1155, %v1157
      %1325 = vmax.xlane.f32.xlu0 %v1324
      %v1326 = vpop.xlane.xlu0 %1325
      %v1327 = vmax.f32 %v1161, %v1163
      %1328 = vmax.xlane.f32.xlu0 %v1327
      %v1329 = vpop.xlane.xlu0 %1328
      %v1330 = vmax.f32 %v1165, %v1167
      %1331 = vmax.xlane.f32.xlu0 %v1330
      %v1332 = vpop.xlane.xlu0 %1331
      %v1333 = vmax.f32 %v1171, %v1173
      %1334 = vmax.xlane.f32.xlu0 %v1333
      %v1335 = vpop.xlane.xlu0 %1334
      %v1336 = vmax.f32 %v1175, %v1177
      %1337 = vmax.xlane.f32.xlu0 %v1336
      %v1338 = vpop.xlane.xlu0 %1337
      %v1339 = vmax.f32 %v1181, %v1183
      %1340 = vmax.xlane.f32.xlu0 %v1339
      %v1341 = vpop.xlane.xlu0 %1340
      %v1342 = vmax.f32 %v1185, %v1187
      %1343 = vmax.xlane.f32.xlu0 %v1342
      %v1344 = vpop.xlane.xlu0 %1343
      %v1345 = vmax.f32 %v1191, %v1193
      %1346 = vmax.xlane.f32.xlu0 %v1345
      %v1347 = vpop.xlane.xlu0 %1346
      %v1348 = vmax.f32 %v1195, %v1197
      %1349 = vmax.xlane.f32.xlu0 %v1348
      %v1350 = vpop.xlane.xlu0 %1349
      %v1351 = vmax.f32 %v1201, %v1203
      %1352 = vmax.xlane.f32.xlu0 %v1351
      %v1353 = vpop.xlane.xlu0 %1352
      %v1354 = vmax.f32 %v1205, %v1207
      %1355 = vmax.xlane.f32.xlu0 %v1354
      %v1356 = vpop.xlane.xlu0 %1355
      %v1357 = vmax.f32 %v1211, %v1213
      %1358 = vmax.xlane.f32.xlu0 %v1357
      %v1359 = vpop.xlane.xlu0 %1358
      %v1360 = vmax.f32 %v1215, %v1217
      %1361 = vmax.xlane.f32.xlu0 %v1360
      %v1362 = vpop.xlane.xlu0 %1361
      %v1363 = vmax.f32 %v1221, %v1223
      %1364 = vmax.xlane.f32.xlu0 %v1363
      %v1365 = vpop.xlane.xlu0 %1364
      %v1366 = vmax.f32 %v1225, %v1227
      %1367 = vmax.xlane.f32.xlu0 %v1366
      %v1368 = vpop.xlane.xlu0 %1367
      %v1369 = vmax.f32 %v1231, %v1233
      %1370 = vmax.xlane.f32.xlu0 %v1369
      %v1371 = vpop.xlane.xlu0 %1370
      %v1372 = vmax.f32 %v1235, %v1237
      %1373 = vmax.xlane.f32.xlu0 %v1372
      %v1374 = vpop.xlane.xlu0 %1373
      %v1375 = vmax.f32 %v1241, %v1243
      %1376 = vmax.xlane.f32.xlu0 %v1375
      %v1377 = vpop.xlane.xlu0 %1376
      %v1378 = vmax.f32 %v1245, %v1247
      %1379 = vmax.xlane.f32.xlu0 %v1378
      %v1380 = vpop.xlane.xlu0 %1379
      %v1381 = vmax.f32 %v1251, %v1253
      %1382 = vmax.xlane.f32.xlu0 %v1381
      %v1383 = vpop.xlane.xlu0 %1382
      %v1384 = vmax.f32 %v1255, %v1257
      %1385 = vmax.xlane.f32.xlu0 %v1384
      %v1386 = vpop.xlane.xlu0 %1385
      %v1387 = vmax.f32 %v1259, %v1293
      %v1388 = vmax.f32 %v1260, %v1296
      %v1389 = vmax.f32 %v1261, %v1299
      %v1390 = vmax.f32 %v1262, %v1302
      %v1391 = vmax.f32 %v1263, %v1305
      %v1392 = vmax.f32 %v1264, %v1308
      %v1393 = vmax.f32 %v1265, %v1311
      %v1394 = vmax.f32 %v1266, %v1314
      %v1395 = vmax.f32 %v1267, %v1317
      %v1396 = vmax.f32 %v1268, %v1320
      %v1397 = vmax.f32 %v1269, %v1323
      %v1398 = vmax.f32 %v1270, %v1326
      %v1399 = vmax.f32 %v1271, %v1329
      %v1400 = vmax.f32 %v1272, %v1332
      %v1401 = vmax.f32 %v1273, %v1335
      %v1402 = vmax.f32 %v1274, %v1338
      %v1403 = vmax.f32 %v1275, %v1341
      %v1404 = vmax.f32 %v1276, %v1344
      %v1405 = vmax.f32 %v1277, %v1347
      %v1406 = vmax.f32 %v1278, %v1350
      %v1407 = vmax.f32 %v1279, %v1353
      %v1408 = vmax.f32 %v1280, %v1356
      %v1409 = vmax.f32 %v1281, %v1359
      %v1410 = vmax.f32 %v1282, %v1362
      %v1411 = vmax.f32 %v1283, %v1365
      %v1412 = vmax.f32 %v1284, %v1368
      %v1413 = vmax.f32 %v1285, %v1371
      %v1414 = vmax.f32 %v1286, %v1374
      %v1415 = vmax.f32 %v1287, %v1377
      %v1416 = vmax.f32 %v1288, %v1380
      %v1417 = vmax.f32 %v1289, %v1383
      %v1418 = vmax.f32 %v1290, %v1386
      %v1419 = vsub.f32 %v1259, %v1387
      %v1420 = vsub.f32 %v1260, %v1388
      %v1421 = vsub.f32 %v1261, %v1389
      %v1422 = vsub.f32 %v1262, %v1390
      %v1423 = vsub.f32 %v1263, %v1391
      %v1424 = vsub.f32 %v1264, %v1392
      %v1425 = vsub.f32 %v1265, %v1393
      %v1426 = vsub.f32 %v1266, %v1394
      %v1427 = vsub.f32 %v1267, %v1395
      %v1428 = vsub.f32 %v1268, %v1396
      %v1429 = vsub.f32 %v1269, %v1397
      %v1430 = vsub.f32 %v1270, %v1398
      %v1431 = vsub.f32 %v1271, %v1399
      %v1432 = vsub.f32 %v1272, %v1400
      %v1433 = vsub.f32 %v1273, %v1401
      %v1434 = vsub.f32 %v1274, %v1402
      %v1435 = vsub.f32 %v1275, %v1403
      %v1436 = vsub.f32 %v1276, %v1404
      %v1437 = vsub.f32 %v1277, %v1405
      %v1438 = vsub.f32 %v1278, %v1406
      %v1439 = vsub.f32 %v1279, %v1407
      %v1440 = vsub.f32 %v1280, %v1408
      %v1441 = vsub.f32 %v1281, %v1409
      %v1442 = vsub.f32 %v1282, %v1410
      %v1443 = vsub.f32 %v1283, %v1411
      %v1444 = vsub.f32 %v1284, %v1412
      %v1445 = vsub.f32 %v1285, %v1413
      %v1446 = vsub.f32 %v1286, %v1414
      %v1447 = vsub.f32 %v1287, %v1415
      %v1448 = vsub.f32 %v1288, %v1416
      %v1449 = vsub.f32 %v1289, %v1417
      %v1450 = vsub.f32 %v1290, %v1418
      %v1451 = vmul.f32 %v1419, 1.442695
      %v1452 = vpow.pop %v1451
      %v1453 = vmul.f32 %v1420, 1.442695
      %v1454 = vpow.pop %v1453
      %v1455 = vmul.f32 %v1421, 1.442695
      %v1456 = vpow.pop %v1455
      %v1457 = vmul.f32 %v1422, 1.442695
      %v1458 = vpow.pop %v1457
      %v1459 = vmul.f32 %v1423, 1.442695
      %v1460 = vpow.pop %v1459
      %v1461 = vmul.f32 %v1424, 1.442695
      %v1462 = vpow.pop %v1461
      %v1463 = vmul.f32 %v1425, 1.442695
      %v1464 = vpow.pop %v1463
      %v1465 = vmul.f32 %v1426, 1.442695
      %v1466 = vpow.pop %v1465
      %v1467 = vmul.f32 %v1427, 1.442695
      %v1468 = vpow.pop %v1467
      %v1469 = vmul.f32 %v1428, 1.442695
      %v1470 = vpow.pop %v1469
      %v1471 = vmul.f32 %v1429, 1.442695
      %v1472 = vpow.pop %v1471
      %v1473 = vmul.f32 %v1430, 1.442695
      %v1474 = vpow.pop %v1473
      %v1475 = vmul.f32 %v1431, 1.442695
      %v1476 = vpow.pop %v1475
      %v1477 = vmul.f32 %v1432, 1.442695
      %v1478 = vpow.pop %v1477
      %v1479 = vmul.f32 %v1433, 1.442695
      %v1480 = vpow.pop %v1479
      %v1481 = vmul.f32 %v1434, 1.442695
      %v1482 = vpow.pop %v1481
      %v1483 = vmul.f32 %v1435, 1.442695
      %v1484 = vpow.pop %v1483
      %v1485 = vmul.f32 %v1436, 1.442695
      %v1486 = vpow.pop %v1485
      %v1487 = vmul.f32 %v1437, 1.442695
      %v1488 = vpow.pop %v1487
      %v1489 = vmul.f32 %v1438, 1.442695
      %v1490 = vpow.pop %v1489
      %v1491 = vmul.f32 %v1439, 1.442695
      %v1492 = vpow.pop %v1491
      %v1493 = vmul.f32 %v1440, 1.442695
      %v1494 = vpow.pop %v1493
      %v1495 = vmul.f32 %v1441, 1.442695
      %v1496 = vpow.pop %v1495
      %v1497 = vmul.f32 %v1442, 1.442695
      %v1498 = vpow.pop %v1497
      %v1499 = vmul.f32 %v1443, 1.442695
      %v1500 = vpow.pop %v1499
      %v1501 = vmul.f32 %v1444, 1.442695
      %v1502 = vpow.pop %v1501
      %v1503 = vmul.f32 %v1445, 1.442695
      %v1504 = vpow.pop %v1503
      %v1505 = vmul.f32 %v1446, 1.442695
      %v1506 = vpow.pop %v1505
      %v1507 = vmul.f32 %v1447, 1.442695
      %v1508 = vpow.pop %v1507
      %v1509 = vmul.f32 %v1448, 1.442695
      %v1510 = vpow.pop %v1509
      %v1511 = vmul.f32 %v1449, 1.442695
      %v1512 = vpow.pop %v1511
      %v1513 = vmul.f32 %v1450, 1.442695
      %v1514 = vpow.pop %v1513
      %1516 = vset.pattern.permute.xlu0 0
      %1517 = vperm.xlu0 %1516, %v1387
      %v1518 = vpop.permute.xlu0 %1517
      %1521 = vset.pattern.permute.xlu0 0
      %1522 = vperm.xlu0 %1521, %v1388
      %v1523 = vpop.permute.xlu0 %1522
      %1526 = vset.pattern.permute.xlu0 0
      %1527 = vperm.xlu0 %1526, %v1389
      %v1528 = vpop.permute.xlu0 %1527
      %1531 = vset.pattern.permute.xlu0 0
      %1532 = vperm.xlu0 %1531, %v1390
      %v1533 = vpop.permute.xlu0 %1532
      %1536 = vset.pattern.permute.xlu0 0
      %1537 = vperm.xlu0 %1536, %v1391
      %v1538 = vpop.permute.xlu0 %1537
      %1541 = vset.pattern.permute.xlu0 0
      %1542 = vperm.xlu0 %1541, %v1392
      %v1543 = vpop.permute.xlu0 %1542
      %1546 = vset.pattern.permute.xlu0 0
      %1547 = vperm.xlu0 %1546, %v1393
      %v1548 = vpop.permute.xlu0 %1547
      %1551 = vset.pattern.permute.xlu0 0
      %1552 = vperm.xlu0 %1551, %v1394
      %v1553 = vpop.permute.xlu0 %1552
      %1556 = vset.pattern.permute.xlu0 0
      %1557 = vperm.xlu0 %1556, %v1395
      %v1558 = vpop.permute.xlu0 %1557
      %1561 = vset.pattern.permute.xlu0 0
      %1562 = vperm.xlu0 %1561, %v1396
      %v1563 = vpop.permute.xlu0 %1562
      %1566 = vset.pattern.permute.xlu0 0
      %1567 = vperm.xlu0 %1566, %v1397
      %v1568 = vpop.permute.xlu0 %1567
      %1571 = vset.pattern.permute.xlu0 0
      %1572 = vperm.xlu0 %1571, %v1398
      %v1573 = vpop.permute.xlu0 %1572
      %1576 = vset.pattern.permute.xlu0 0
      %1577 = vperm.xlu0 %1576, %v1399
      %v1578 = vpop.permute.xlu0 %1577
      %1581 = vset.pattern.permute.xlu0 0
      %1582 = vperm.xlu0 %1581, %v1400
      %v1583 = vpop.permute.xlu0 %1582
      %1586 = vset.pattern.permute.xlu0 0
      %1587 = vperm.xlu0 %1586, %v1401
      %v1588 = vpop.permute.xlu0 %1587
      %1591 = vset.pattern.permute.xlu0 0
      %1592 = vperm.xlu0 %1591, %v1402
      %v1593 = vpop.permute.xlu0 %1592
      %1596 = vset.pattern.permute.xlu0 0
      %1597 = vperm.xlu0 %1596, %v1403
      %v1598 = vpop.permute.xlu0 %1597
      %1601 = vset.pattern.permute.xlu0 0
      %1602 = vperm.xlu0 %1601, %v1404
      %v1603 = vpop.permute.xlu0 %1602
      %1606 = vset.pattern.permute.xlu0 0
      %1607 = vperm.xlu0 %1606, %v1405
      %v1608 = vpop.permute.xlu0 %1607
      %1611 = vset.pattern.permute.xlu0 0
      %1612 = vperm.xlu0 %1611, %v1406
      %v1613 = vpop.permute.xlu0 %1612
      %1616 = vset.pattern.permute.xlu0 0
      %1617 = vperm.xlu0 %1616, %v1407
      %v1618 = vpop.permute.xlu0 %1617
      %1621 = vset.pattern.permute.xlu0 0
      %1622 = vperm.xlu0 %1621, %v1408
      %v1623 = vpop.permute.xlu0 %1622
      %1626 = vset.pattern.permute.xlu0 0
      %1627 = vperm.xlu0 %1626, %v1409
      %v1628 = vpop.permute.xlu0 %1627
      %1631 = vset.pattern.permute.xlu0 0
      %1632 = vperm.xlu0 %1631, %v1410
      %v1633 = vpop.permute.xlu0 %1632
      %1636 = vset.pattern.permute.xlu0 0
      %1637 = vperm.xlu0 %1636, %v1411
      %v1638 = vpop.permute.xlu0 %1637
      %1641 = vset.pattern.permute.xlu0 0
      %1642 = vperm.xlu0 %1641, %v1412
      %v1643 = vpop.permute.xlu0 %1642
      %1646 = vset.pattern.permute.xlu0 0
      %1647 = vperm.xlu0 %1646, %v1413
      %v1648 = vpop.permute.xlu0 %1647
      %1651 = vset.pattern.permute.xlu0 0
      %1652 = vperm.xlu0 %1651, %v1414
      %v1653 = vpop.permute.xlu0 %1652
      %1656 = vset.pattern.permute.xlu0 0
      %1657 = vperm.xlu0 %1656, %v1415
      %v1658 = vpop.permute.xlu0 %1657
      %1661 = vset.pattern.permute.xlu0 0
      %1662 = vperm.xlu0 %1661, %v1416
      %v1663 = vpop.permute.xlu0 %1662
      %1666 = vset.pattern.permute.xlu0 0
      %1667 = vperm.xlu0 %1666, %v1417
      %v1668 = vpop.permute.xlu0 %1667
      %1671 = vset.pattern.permute.xlu0 0
      %1672 = vperm.xlu0 %1671, %v1418
      %v1673 = vpop.permute.xlu0 %1672
      %v1675 = vsub.f32 %v1101, %v1518
      %v1676 = vsub.f32 %v1103, %v1518
      %v1677 = vsub.f32 %v1105, %v1523
      %v1678 = vsub.f32 %v1107, %v1523
      %v1679 = vsub.f32 %v1111, %v1528
      %v1680 = vsub.f32 %v1113, %v1528
      %v1681 = vsub.f32 %v1115, %v1533
      %v1682 = vsub.f32 %v1117, %v1533
      %v1683 = vsub.f32 %v1121, %v1538
      %v1684 = vsub.f32 %v1123, %v1538
      %v1685 = vsub.f32 %v1125, %v1543
      %v1686 = vsub.f32 %v1127, %v1543
      %v1687 = vsub.f32 %v1131, %v1548
      %v1688 = vsub.f32 %v1133, %v1548
      %v1689 = vsub.f32 %v1135, %v1553
      %v1690 = vsub.f32 %v1137, %v1553
      %v1691 = vsub.f32 %v1141, %v1558
      %v1692 = vsub.f32 %v1143, %v1558
      %v1693 = vsub.f32 %v1145, %v1563
      %v1694 = vsub.f32 %v1147, %v1563
      %v1695 = vsub.f32 %v1151, %v1568
      %v1696 = vsub.f32 %v1153, %v1568
      %v1697 = vsub.f32 %v1155, %v1573
      %v1698 = vsub.f32 %v1157, %v1573
      %v1699 = vsub.f32 %v1161, %v1578
      %v1700 = vsub.f32 %v1163, %v1578
      %v1701 = vsub.f32 %v1165, %v1583
      %v1702 = vsub.f32 %v1167, %v1583
      %v1703 = vsub.f32 %v1171, %v1588
      %v1704 = vsub.f32 %v1173, %v1588
      %v1705 = vsub.f32 %v1175, %v1593
      %v1706 = vsub.f32 %v1177, %v1593
      %v1707 = vsub.f32 %v1181, %v1598
      %v1708 = vsub.f32 %v1183, %v1598
      %v1709 = vsub.f32 %v1185, %v1603
      %v1710 = vsub.f32 %v1187, %v1603
      %v1711 = vsub.f32 %v1191, %v1608
      %v1712 = vsub.f32 %v1193, %v1608
      %v1713 = vsub.f32 %v1195, %v1613
      %v1714 = vsub.f32 %v1197, %v1613
      %v1715 = vsub.f32 %v1201, %v1618
      %v1716 = vsub.f32 %v1203, %v1618
      %v1717 = vsub.f32 %v1205, %v1623
      %v1718 = vsub.f32 %v1207, %v1623
      %v1719 = vsub.f32 %v1211, %v1628
      %v1720 = vsub.f32 %v1213, %v1628
      %v1721 = vsub.f32 %v1215, %v1633
      %v1722 = vsub.f32 %v1217, %v1633
      %v1723 = vsub.f32 %v1221, %v1638
      %v1724 = vsub.f32 %v1223, %v1638
      %v1725 = vsub.f32 %v1225, %v1643
      %v1726 = vsub.f32 %v1227, %v1643
      %v1727 = vsub.f32 %v1231, %v1648
      %v1728 = vsub.f32 %v1233, %v1648
      %v1729 = vsub.f32 %v1235, %v1653
      %v1730 = vsub.f32 %v1237, %v1653
      %v1731 = vsub.f32 %v1241, %v1658
      %v1732 = vsub.f32 %v1243, %v1658
      %v1733 = vsub.f32 %v1245, %v1663
      %v1734 = vsub.f32 %v1247, %v1663
      %v1735 = vsub.f32 %v1251, %v1668
      %v1736 = vsub.f32 %v1253, %v1668
      %v1737 = vsub.f32 %v1255, %v1673
      %v1738 = vsub.f32 %v1257, %v1673
      %v1739 = vpack.c.bf16 %v1677, %v1675
      %v1740 = vpack.c.bf16 %v1678, %v1676
      %v1741 = vpack.c.bf16 %v1681, %v1679
      %v1742 = vpack.c.bf16 %v1682, %v1680
      %v1743 = vpack.c.bf16 %v1685, %v1683
      %v1744 = vpack.c.bf16 %v1686, %v1684
      %v1745 = vpack.c.bf16 %v1689, %v1687
      %v1746 = vpack.c.bf16 %v1690, %v1688
      %v1747 = vpack.c.bf16 %v1693, %v1691
      %v1748 = vpack.c.bf16 %v1694, %v1692
      %v1749 = vpack.c.bf16 %v1697, %v1695
      %v1750 = vpack.c.bf16 %v1698, %v1696
      %v1751 = vpack.c.bf16 %v1701, %v1699
      %v1752 = vpack.c.bf16 %v1702, %v1700
      %v1753 = vpack.c.bf16 %v1705, %v1703
      %v1754 = vpack.c.bf16 %v1706, %v1704
      %v1755 = vpack.c.bf16 %v1709, %v1707
      %v1756 = vpack.c.bf16 %v1710, %v1708
      %v1757 = vpack.c.bf16 %v1713, %v1711
      %v1758 = vpack.c.bf16 %v1714, %v1712
      %v1759 = vpack.c.bf16 %v1717, %v1715
      %v1760 = vpack.c.bf16 %v1718, %v1716
      %v1761 = vpack.c.bf16 %v1721, %v1719
      %v1762 = vpack.c.bf16 %v1722, %v1720
      %v1763 = vpack.c.bf16 %v1725, %v1723
      %v1764 = vpack.c.bf16 %v1726, %v1724
      %v1765 = vpack.c.bf16 %v1729, %v1727
      %v1766 = vpack.c.bf16 %v1730, %v1728
      %v1767 = vpack.c.bf16 %v1733, %v1731
      %v1768 = vpack.c.bf16 %v1734, %v1732
      %v1769 = vpack.c.bf16 %v1737, %v1735
      %v1770 = vpack.c.bf16 %v1738, %v1736
      %v1772 = vmul.bf16 %v1739, 1069105081
      %v1773 = vpow.bf16.pop %v1772
      %v1775 = vmul.bf16 %v1740, 1069105081
      %v1776 = vpow.bf16.pop %v1775
      %v1778 = vmul.bf16 %v1741, 1069105081
      %v1779 = vpow.bf16.pop %v1778
      %v1781 = vmul.bf16 %v1742, 1069105081
      %v1782 = vpow.bf16.pop %v1781
      %v1784 = vmul.bf16 %v1743, 1069105081
      %v1785 = vpow.bf16.pop %v1784
      %v1787 = vmul.bf16 %v1744, 1069105081
      %v1788 = vpow.bf16.pop %v1787
      %v1790 = vmul.bf16 %v1745, 1069105081
      %v1791 = vpow.bf16.pop %v1790
      %v1793 = vmul.bf16 %v1746, 1069105081
      %v1794 = vpow.bf16.pop %v1793
      %v1796 = vmul.bf16 %v1747, 1069105081
      %v1797 = vpow.bf16.pop %v1796
      %v1799 = vmul.bf16 %v1748, 1069105081
      %v1800 = vpow.bf16.pop %v1799
      %v1802 = vmul.bf16 %v1749, 1069105081
      %v1803 = vpow.bf16.pop %v1802
      %v1805 = vmul.bf16 %v1750, 1069105081
      %v1806 = vpow.bf16.pop %v1805
      %v1808 = vmul.bf16 %v1751, 1069105081
      %v1809 = vpow.bf16.pop %v1808
      %v1811 = vmul.bf16 %v1752, 1069105081
      %v1812 = vpow.bf16.pop %v1811
      %v1814 = vmul.bf16 %v1753, 1069105081
      %v1815 = vpow.bf16.pop %v1814
      %v1817 = vmul.bf16 %v1754, 1069105081
      %v1818 = vpow.bf16.pop %v1817
      %v1820 = vmul.bf16 %v1755, 1069105081
      %v1821 = vpow.bf16.pop %v1820
      %v1823 = vmul.bf16 %v1756, 1069105081
      %v1824 = vpow.bf16.pop %v1823
      %v1826 = vmul.bf16 %v1757, 1069105081
      %v1827 = vpow.bf16.pop %v1826
      %v1829 = vmul.bf16 %v1758, 1069105081
      %v1830 = vpow.bf16.pop %v1829
      %v1832 = vmul.bf16 %v1759, 1069105081
      %v1833 = vpow.bf16.pop %v1832
      %v1835 = vmul.bf16 %v1760, 1069105081
      %v1836 = vpow.bf16.pop %v1835
      %v1838 = vmul.bf16 %v1761, 1069105081
      %v1839 = vpow.bf16.pop %v1838
      %v1841 = vmul.bf16 %v1762, 1069105081
      %v1842 = vpow.bf16.pop %v1841
      %v1844 = vmul.bf16 %v1763, 1069105081
      %v1845 = vpow.bf16.pop %v1844
      %v1847 = vmul.bf16 %v1764, 1069105081
      %v1848 = vpow.bf16.pop %v1847
      %v1850 = vmul.bf16 %v1765, 1069105081
      %v1851 = vpow.bf16.pop %v1850
      %v1853 = vmul.bf16 %v1766, 1069105081
      %v1854 = vpow.bf16.pop %v1853
      %v1856 = vmul.bf16 %v1767, 1069105081
      %v1857 = vpow.bf16.pop %v1856
      %v1859 = vmul.bf16 %v1768, 1069105081
      %v1860 = vpow.bf16.pop %v1859
      %v1862 = vmul.bf16 %v1769, 1069105081
      %v1863 = vpow.bf16.pop %v1862
      %v1865 = vmul.bf16 %v1770, 1069105081
      %v1866 = vpow.bf16.pop %v1865
      %1869 = vmatprep.subr.bf16.mxu0 0
      %1870 = vmatpush1.bf16.xpose.msra.mxu0 0
      %1871 = vmatprep.subr.bf16.mxu0 0
      %1872 = vmatpush1.bf16.xpose.msra.mxu0 0
      %1873 = vmatprep.subr.bf16.mxu0 0
      %1874 = vmatpush1.bf16.xpose.msra.mxu0 0
      %1875 = vmatprep.subr.bf16.mxu0 0
      %1876 = vmatpush1.bf16.xpose.msra.mxu0 0
      %1877 = vmatprep.subr.bf16.mxu0 0
      %1878 = vmatpush1.bf16.xpose.msra.mxu0 0
      %1879 = vmatprep.subr.bf16.mxu0 0
      %1880 = vmatpush1.bf16.xpose.msra.mxu0 0
      %1881 = vmatprep.subr.bf16.mxu0 0
      %1882 = vmatpush1.bf16.xpose.msra.mxu0 0
      %1883 = vmatprep.subr.bf16.mxu0 %v1006
      %1884 = vmatpush1.bf16.xpose.msra.mxu0 %v1005
      %1885 = vmatprep.subr.bf16.mxu0 0
      %1886 = vmatpush2.bf16.xpose.msra.mxu0 0
      %1887 = vmatprep.subr.bf16.mxu0 0
      %1888 = vmatpush2.bf16.xpose.msra.mxu0 0
      %1889 = vmatprep.subr.bf16.mxu0 0
      %1890 = vmatpush2.bf16.xpose.msra.mxu0 0
      %1891 = vmatprep.subr.bf16.mxu0 0
      %1892 = vmatpush2.bf16.xpose.msra.mxu0 0
      %1893 = vmatprep.subr.bf16.mxu0 0
      %1894 = vmatpush2.bf16.xpose.msra.mxu0 0
      %1895 = vmatprep.subr.bf16.mxu0 0
      %1896 = vmatpush2.bf16.xpose.msra.mxu0 0
      %1897 = vmatprep.subr.bf16.mxu0 0
      %1898 = vmatpush2.bf16.xpose.msra.mxu0 0
      %1899 = vmatprep.subr.bf16.mxu0 0
      %1900 = vmatpush2.bf16.xpose.msra.mxu0 0
      %1901 = vmatprep.mubr.bf16.mxu0 %v1776
      %1902 = vmatmul.mubr.bf16.gmra.mxu0 %v1773
      %v1903 = vpop.f32.mrf.mxu0
      %v1904 = vadd.f32 0.0, %v1903
      %v1905 = vpop.f32.mrf.mxu0
      %v1906 = vpop.f32.mrf.mxu0
      %v1907 = vadd.f32 0.0, %v1906
      %v1908 = vpop.f32.mrf.mxu0
      %1909 = vmatprep.mubr.bf16.mxu0 %v1782
      %1910 = vmatmul.mubr.bf16.gmra.mxu0 %v1779
      %v1911 = vpop.f32.mrf.mxu0
      %v1912 = vadd.f32 0.0, %v1911
      %v1913 = vpop.f32.mrf.mxu0
      %v1914 = vpop.f32.mrf.mxu0
      %v1915 = vadd.f32 0.0, %v1914
      %v1916 = vpop.f32.mrf.mxu0
      %1917 = vmatprep.mubr.bf16.mxu0 %v1788
      %1918 = vmatmul.mubr.bf16.gmra.mxu0 %v1785
      %v1919 = vpop.f32.mrf.mxu0
      %v1920 = vadd.f32 0.0, %v1919
      %v1921 = vpop.f32.mrf.mxu0
      %v1922 = vpop.f32.mrf.mxu0
      %v1923 = vadd.f32 0.0, %v1922
      %v1924 = vpop.f32.mrf.mxu0
      %1925 = vmatprep.mubr.bf16.mxu0 %v1794
      %1926 = vmatmul.mubr.bf16.gmra.mxu0 %v1791
      %v1927 = vpop.f32.mrf.mxu0
      %v1928 = vadd.f32 0.0, %v1927
      %v1929 = vpop.f32.mrf.mxu0
      %v1930 = vpop.f32.mrf.mxu0
      %v1931 = vadd.f32 0.0, %v1930
      %v1932 = vpop.f32.mrf.mxu0
      %1933 = vmatprep.mubr.bf16.mxu0 %v1800
      %1934 = vmatmul.mubr.bf16.gmra.mxu0 %v1797
      %v1935 = vpop.f32.mrf.mxu0
      %v1936 = vadd.f32 0.0, %v1935
      %v1937 = vpop.f32.mrf.mxu0
      %v1938 = vpop.f32.mrf.mxu0
      %v1939 = vadd.f32 0.0, %v1938
      %v1940 = vpop.f32.mrf.mxu0
      %1941 = vmatprep.mubr.bf16.mxu0 %v1806
      %1942 = vmatmul.mubr.bf16.gmra.mxu0 %v1803
      %v1943 = vpop.f32.mrf.mxu0
      %v1944 = vadd.f32 0.0, %v1943
      %v1945 = vpop.f32.mrf.mxu0
      %v1946 = vpop.f32.mrf.mxu0
      %v1947 = vadd.f32 0.0, %v1946
      %v1948 = vpop.f32.mrf.mxu0
      %1949 = vmatprep.mubr.bf16.mxu0 %v1812
      %1950 = vmatmul.mubr.bf16.gmra.mxu0 %v1809
      %v1951 = vpop.f32.mrf.mxu0
      %v1952 = vadd.f32 0.0, %v1951
      %v1953 = vpop.f32.mrf.mxu0
      %v1954 = vpop.f32.mrf.mxu0
      %v1955 = vadd.f32 0.0, %v1954
      %v1956 = vpop.f32.mrf.mxu0
      %1957 = vmatprep.mubr.bf16.mxu0 %v1818
      %1958 = vmatmul.mubr.bf16.gmra.mxu0 %v1815
      %v1959 = vpop.f32.mrf.mxu0
      %v1960 = vadd.f32 0.0, %v1959
      %v1961 = vpop.f32.mrf.mxu0
      %v1962 = vpop.f32.mrf.mxu0
      %v1963 = vadd.f32 0.0, %v1962
      %v1964 = vpop.f32.mrf.mxu0
      %1965 = vmatprep.mubr.bf16.mxu0 %v1824
      %1966 = vmatmul.mubr.bf16.gmra.mxu0 %v1821
      %v1967 = vpop.f32.mrf.mxu0
      %v1968 = vadd.f32 0.0, %v1967
      %v1969 = vpop.f32.mrf.mxu0
      %v1970 = vpop.f32.mrf.mxu0
      %v1971 = vadd.f32 0.0, %v1970
      %v1972 = vpop.f32.mrf.mxu0
      %1973 = vmatprep.mubr.bf16.mxu0 %v1830
      %1974 = vmatmul.mubr.bf16.gmra.mxu0 %v1827
      %v1975 = vpop.f32.mrf.mxu0
      %v1976 = vadd.f32 0.0, %v1975
      %v1977 = vpop.f32.mrf.mxu0
      %v1978 = vpop.f32.mrf.mxu0
      %v1979 = vadd.f32 0.0, %v1978
      %v1980 = vpop.f32.mrf.mxu0
      %1981 = vmatprep.mubr.bf16.mxu0 %v1836
      %1982 = vmatmul.mubr.bf16.gmra.mxu0 %v1833
      %v1983 = vpop.f32.mrf.mxu0
      %v1984 = vadd.f32 0.0, %v1983
      %v1985 = vpop.f32.mrf.mxu0
      %v1986 = vpop.f32.mrf.mxu0
      %v1987 = vadd.f32 0.0, %v1986
      %v1988 = vpop.f32.mrf.mxu0
      %1989 = vmatprep.mubr.bf16.mxu0 %v1842
      %1990 = vmatmul.mubr.bf16.gmra.mxu0 %v1839
      %v1991 = vpop.f32.mrf.mxu0
      %v1992 = vadd.f32 0.0, %v1991
      %v1993 = vpop.f32.mrf.mxu0
      %v1994 = vpop.f32.mrf.mxu0
      %v1995 = vadd.f32 0.0, %v1994
      %v1996 = vpop.f32.mrf.mxu0
      %1997 = vmatprep.mubr.bf16.mxu0 %v1848
      %1998 = vmatmul.mubr.bf16.gmra.mxu0 %v1845
      %v1999 = vpop.f32.mrf.mxu0
      %v2000 = vadd.f32 0.0, %v1999
      %v2001 = vpop.f32.mrf.mxu0
      %v2002 = vpop.f32.mrf.mxu0
      %v2003 = vadd.f32 0.0, %v2002
      %v2004 = vpop.f32.mrf.mxu0
      %2005 = vmatprep.mubr.bf16.mxu0 %v1854
      %2006 = vmatmul.mubr.bf16.gmra.mxu0 %v1851
      %v2007 = vpop.f32.mrf.mxu0
      %v2008 = vadd.f32 0.0, %v2007
      %v2009 = vpop.f32.mrf.mxu0
      %v2010 = vpop.f32.mrf.mxu0
      %v2011 = vadd.f32 0.0, %v2010
      %v2012 = vpop.f32.mrf.mxu0
      %2013 = vmatprep.mubr.bf16.mxu0 %v1860
      %2014 = vmatmul.mubr.bf16.gmra.mxu0 %v1857
      %v2015 = vpop.f32.mrf.mxu0
      %v2016 = vadd.f32 0.0, %v2015
      %v2017 = vpop.f32.mrf.mxu0
      %v2018 = vpop.f32.mrf.mxu0
      %v2019 = vadd.f32 0.0, %v2018
      %v2020 = vpop.f32.mrf.mxu0
      %2021 = vmatprep.mubr.bf16.mxu0 %v1866
      %2022 = vmatmul.mubr.bf16.gmra.mxu0 %v1863
      %v2023 = vpop.f32.mrf.mxu0
      %v2024 = vadd.f32 0.0, %v2023
      %v2025 = vpop.f32.mrf.mxu0
      %v2026 = vpop.f32.mrf.mxu0
      %v2027 = vadd.f32 0.0, %v2026
      %v2028 = vpop.f32.mrf.mxu0
      %2029 = vdwg.mxu0
      %v2030 = vld [vmem:[#allocation4] sm:$0xff]
      %v2031 = vld [vmem:[#allocation4 + $0x8] sm:$0xff]
      %v2032 = vld [vmem:[#allocation4 + $0x10] sm:$0xff]
      %v2033 = vld [vmem:[#allocation4 + $0x18] sm:$0xff]
      %v2034 = vld [vmem:[#allocation4 + $0x20] sm:$0xff]
      %v2035 = vld [vmem:[#allocation4 + $0x28] sm:$0xff]
      %v2036 = vld [vmem:[#allocation4 + $0x30] sm:$0xff]
      %v2037 = vld [vmem:[#allocation4 + $0x38] sm:$0xff]
      %v2038 = vld [vmem:[#allocation4 + $0x40] sm:$0xff]
      %v2039 = vld [vmem:[#allocation4 + $0x48] sm:$0xff]
      %v2040 = vld [vmem:[#allocation4 + $0x50] sm:$0xff]
      %v2041 = vld [vmem:[#allocation4 + $0x58] sm:$0xff]
      %v2042 = vld [vmem:[#allocation4 + $0x60] sm:$0xff]
      %v2043 = vld [vmem:[#allocation4 + $0x68] sm:$0xff]
      %v2044 = vld [vmem:[#allocation4 + $0x70] sm:$0xff]
      %v2045 = vld [vmem:[#allocation4 + $0x78] sm:$0xff]
      %v2046 = vld [vmem:[#allocation4 + $0x80] sm:$0xff]
      %v2047 = vld [vmem:[#allocation4 + $0x88] sm:$0xff]
      %v2048 = vld [vmem:[#allocation4 + $0x90] sm:$0xff]
      %v2049 = vld [vmem:[#allocation4 + $0x98] sm:$0xff]
      %v2050 = vld [vmem:[#allocation4 + $0xa0] sm:$0xff]
      %v2051 = vld [vmem:[#allocation4 + $0xa8] sm:$0xff]
      %v2052 = vld [vmem:[#allocation4 + $0xb0] sm:$0xff]
      %v2053 = vld [vmem:[#allocation4 + $0xb8] sm:$0xff]
      %v2054 = vld [vmem:[#allocation4 + $0xc0] sm:$0xff]
      %v2055 = vld [vmem:[#allocation4 + $0xc8] sm:$0xff]
      %v2056 = vld [vmem:[#allocation4 + $0xd0] sm:$0xff]
      %v2057 = vld [vmem:[#allocation4 + $0xd8] sm:$0xff]
      %v2058 = vld [vmem:[#allocation4 + $0xe0] sm:$0xff]
      %v2059 = vld [vmem:[#allocation4 + $0xe8] sm:$0xff]
      %v2060 = vld [vmem:[#allocation4 + $0xf0] sm:$0xff]
      %v2061 = vld [vmem:[#allocation4 + $0xf8] sm:$0xff]
      %2063 = vset.pattern.permute.xlu0 0
      %2064 = vperm.xlu0 %2063, %v1452
      %v2065 = vpop.permute.xlu0 %2064
      %2068 = vset.pattern.permute.xlu0 0
      %2069 = vperm.xlu0 %2068, %v1454
      %v2070 = vpop.permute.xlu0 %2069
      %2073 = vset.pattern.permute.xlu0 0
      %2074 = vperm.xlu0 %2073, %v1456
      %v2075 = vpop.permute.xlu0 %2074
      %2078 = vset.pattern.permute.xlu0 0
      %2079 = vperm.xlu0 %2078, %v1458
      %v2080 = vpop.permute.xlu0 %2079
      %2083 = vset.pattern.permute.xlu0 0
      %2084 = vperm.xlu0 %2083, %v1460
      %v2085 = vpop.permute.xlu0 %2084
      %2088 = vset.pattern.permute.xlu0 0
      %2089 = vperm.xlu0 %2088, %v1462
      %v2090 = vpop.permute.xlu0 %2089
      %2093 = vset.pattern.permute.xlu0 0
      %2094 = vperm.xlu0 %2093, %v1464
      %v2095 = vpop.permute.xlu0 %2094
      %2098 = vset.pattern.permute.xlu0 0
      %2099 = vperm.xlu0 %2098, %v1466
      %v2100 = vpop.permute.xlu0 %2099
      %2103 = vset.pattern.permute.xlu0 0
      %2104 = vperm.xlu0 %2103, %v1468
      %v2105 = vpop.permute.xlu0 %2104
      %2108 = vset.pattern.permute.xlu0 0
      %2109 = vperm.xlu0 %2108, %v1470
      %v2110 = vpop.permute.xlu0 %2109
      %2113 = vset.pattern.permute.xlu0 0
      %2114 = vperm.xlu0 %2113, %v1472
      %v2115 = vpop.permute.xlu0 %2114
      %2118 = vset.pattern.permute.xlu0 0
      %2119 = vperm.xlu0 %2118, %v1474
      %v2120 = vpop.permute.xlu0 %2119
      %2123 = vset.pattern.permute.xlu0 0
      %2124 = vperm.xlu0 %2123, %v1476
      %v2125 = vpop.permute.xlu0 %2124
      %2128 = vset.pattern.permute.xlu0 0
      %2129 = vperm.xlu0 %2128, %v1478
      %v2130 = vpop.permute.xlu0 %2129
      %2133 = vset.pattern.permute.xlu0 0
      %2134 = vperm.xlu0 %2133, %v1480
      %v2135 = vpop.permute.xlu0 %2134
      %2138 = vset.pattern.permute.xlu0 0
      %2139 = vperm.xlu0 %2138, %v1482
      %v2140 = vpop.permute.xlu0 %2139
      %2143 = vset.pattern.permute.xlu0 0
      %2144 = vperm.xlu0 %2143, %v1484
      %v2145 = vpop.permute.xlu0 %2144
      %2148 = vset.pattern.permute.xlu0 0
      %2149 = vperm.xlu0 %2148, %v1486
      %v2150 = vpop.permute.xlu0 %2149
      %2153 = vset.pattern.permute.xlu0 0
      %2154 = vperm.xlu0 %2153, %v1488
      %v2155 = vpop.permute.xlu0 %2154
      %2158 = vset.pattern.permute.xlu0 0
      %2159 = vperm.xlu0 %2158, %v1490
      %v2160 = vpop.permute.xlu0 %2159
      %2163 = vset.pattern.permute.xlu0 0
      %2164 = vperm.xlu0 %2163, %v1492
      %v2165 = vpop.permute.xlu0 %2164
      %2168 = vset.pattern.permute.xlu0 0
      %2169 = vperm.xlu0 %2168, %v1494
      %v2170 = vpop.permute.xlu0 %2169
      %2173 = vset.pattern.permute.xlu0 0
      %2174 = vperm.xlu0 %2173, %v1496
      %v2175 = vpop.permute.xlu0 %2174
      %2178 = vset.pattern.permute.xlu0 0
      %2179 = vperm.xlu0 %2178, %v1498
      %v2180 = vpop.permute.xlu0 %2179
      %2183 = vset.pattern.permute.xlu0 0
      %2184 = vperm.xlu0 %2183, %v1500
      %v2185 = vpop.permute.xlu0 %2184
      %2188 = vset.pattern.permute.xlu0 0
      %2189 = vperm.xlu0 %2188, %v1502
      %v2190 = vpop.permute.xlu0 %2189
      %2193 = vset.pattern.permute.xlu0 0
      %2194 = vperm.xlu0 %2193, %v1504
      %v2195 = vpop.permute.xlu0 %2194
      %2198 = vset.pattern.permute.xlu0 0
      %2199 = vperm.xlu0 %2198, %v1506
      %v2200 = vpop.permute.xlu0 %2199
      %2203 = vset.pattern.permute.xlu0 0
      %2204 = vperm.xlu0 %2203, %v1508
      %v2205 = vpop.permute.xlu0 %2204
      %2208 = vset.pattern.permute.xlu0 0
      %2209 = vperm.xlu0 %2208, %v1510
      %v2210 = vpop.permute.xlu0 %2209
      %2213 = vset.pattern.permute.xlu0 0
      %2214 = vperm.xlu0 %2213, %v1512
      %v2215 = vpop.permute.xlu0 %2214
      %2218 = vset.pattern.permute.xlu0 0
      %2219 = vperm.xlu0 %2218, %v1514
      %v2220 = vpop.permute.xlu0 %2219
      %v2222 = vmul.f32 %v2065, %v2030
      %v2223 = vmul.f32 %v2070, %v2031
      %v2224 = vmul.f32 %v2075, %v2032
      %v2225 = vmul.f32 %v2080, %v2033
      %v2226 = vmul.f32 %v2085, %v2034
      %v2227 = vmul.f32 %v2090, %v2035
      %v2228 = vmul.f32 %v2095, %v2036
      %v2229 = vmul.f32 %v2100, %v2037
      %v2230 = vmul.f32 %v2105, %v2038
      %v2231 = vmul.f32 %v2110, %v2039
      %v2232 = vmul.f32 %v2115, %v2040
      %v2233 = vmul.f32 %v2120, %v2041
      %v2234 = vmul.f32 %v2125, %v2042
      %v2235 = vmul.f32 %v2130, %v2043
      %v2236 = vmul.f32 %v2135, %v2044
      %v2237 = vmul.f32 %v2140, %v2045
      %v2238 = vmul.f32 %v2145, %v2046
      %v2239 = vmul.f32 %v2150, %v2047
      %v2240 = vmul.f32 %v2155, %v2048
      %v2241 = vmul.f32 %v2160, %v2049
      %v2242 = vmul.f32 %v2165, %v2050
      %v2243 = vmul.f32 %v2170, %v2051
      %v2244 = vmul.f32 %v2175, %v2052
      %v2245 = vmul.f32 %v2180, %v2053
      %v2246 = vmul.f32 %v2185, %v2054
      %v2247 = vmul.f32 %v2190, %v2055
      %v2248 = vmul.f32 %v2195, %v2056
      %v2249 = vmul.f32 %v2200, %v2057
      %v2250 = vmul.f32 %v2205, %v2058
      %v2251 = vmul.f32 %v2210, %v2059
      %v2252 = vmul.f32 %v2215, %v2060
      %v2253 = vmul.f32 %v2220, %v2061
      %v2254 = vadd.f32 %v2222, %v1904
      %v2255 = vadd.f32 %v2223, %v1907
      %v2256 = vadd.f32 %v2224, %v1912
      %v2257 = vadd.f32 %v2225, %v1915
      %v2258 = vadd.f32 %v2226, %v1920
      %v2259 = vadd.f32 %v2227, %v1923
      %v2260 = vadd.f32 %v2228, %v1928
      %v2261 = vadd.f32 %v2229, %v1931
      %v2262 = vadd.f32 %v2230, %v1936
      %v2263 = vadd.f32 %v2231, %v1939
      %v2264 = vadd.f32 %v2232, %v1944
      %v2265 = vadd.f32 %v2233, %v1947
      %v2266 = vadd.f32 %v2234, %v1952
      %v2267 = vadd.f32 %v2235, %v1955
      %v2268 = vadd.f32 %v2236, %v1960
      %v2269 = vadd.f32 %v2237, %v1963
      %v2270 = vadd.f32 %v2238, %v1968
      %v2271 = vadd.f32 %v2239, %v1971
      %v2272 = vadd.f32 %v2240, %v1976
      %v2273 = vadd.f32 %v2241, %v1979
      %v2274 = vadd.f32 %v2242, %v1984
      %v2275 = vadd.f32 %v2243, %v1987
      %v2276 = vadd.f32 %v2244, %v1992
      %v2277 = vadd.f32 %v2245, %v1995
      %v2278 = vadd.f32 %v2246, %v2000
      %v2279 = vadd.f32 %v2247, %v2003
      %v2280 = vadd.f32 %v2248, %v2008
      %v2281 = vadd.f32 %v2249, %v2011
      %v2282 = vadd.f32 %v2250, %v2016
      %v2283 = vadd.f32 %v2251, %v2019
      %v2284 = vadd.f32 %v2252, %v2024
      %v2285 = vadd.f32 %v2253, %v2027
      %2286 = vst.msk [vmem:[#allocation4] sm:$0xff] %vm1007, %v2254
      %2287 = vst.msk [vmem:[#allocation4 + $0x8] sm:$0xff] %vm1007, %v2255
      %2288 = vst.msk [vmem:[#allocation4 + $0x10] sm:$0xff] %vm1007, %v2256
      %2289 = vst.msk [vmem:[#allocation4 + $0x18] sm:$0xff] %vm1007, %v2257
      %2290 = vst.msk [vmem:[#allocation4 + $0x20] sm:$0xff] %vm1007, %v2258
      %2291 = vst.msk [vmem:[#allocation4 + $0x28] sm:$0xff] %vm1007, %v2259
      %2292 = vst.msk [vmem:[#allocation4 + $0x30] sm:$0xff] %vm1007, %v2260
      %2293 = vst.msk [vmem:[#allocation4 + $0x38] sm:$0xff] %vm1007, %v2261
      %2294 = vst.msk [vmem:[#allocation4 + $0x40] sm:$0xff] %vm1007, %v2262
      %2295 = vst.msk [vmem:[#allocation4 + $0x48] sm:$0xff] %vm1007, %v2263
      %2296 = vst.msk [vmem:[#allocation4 + $0x50] sm:$0xff] %vm1007, %v2264
      %2297 = vst.msk [vmem:[#allocation4 + $0x58] sm:$0xff] %vm1007, %v2265
      %2298 = vst.msk [vmem:[#allocation4 + $0x60] sm:$0xff] %vm1007, %v2266
      %2299 = vst.msk [vmem:[#allocation4 + $0x68] sm:$0xff] %vm1007, %v2267
      %2300 = vst.msk [vmem:[#allocation4 + $0x70] sm:$0xff] %vm1007, %v2268
      %2301 = vst.msk [vmem:[#allocation4 + $0x78] sm:$0xff] %vm1007, %v2269
      %2302 = vst.msk [vmem:[#allocation4 + $0x80] sm:$0xff] %vm1007, %v2270
      %2303 = vst.msk [vmem:[#allocation4 + $0x88] sm:$0xff] %vm1007, %v2271
      %2304 = vst.msk [vmem:[#allocation4 + $0x90] sm:$0xff] %vm1007, %v2272
      %2305 = vst.msk [vmem:[#allocation4 + $0x98] sm:$0xff] %vm1007, %v2273
      %2306 = vst.msk [vmem:[#allocation4 + $0xa0] sm:$0xff] %vm1007, %v2274
      %2307 = vst.msk [vmem:[#allocation4 + $0xa8] sm:$0xff] %vm1007, %v2275
      %2308 = vst.msk [vmem:[#allocation4 + $0xb0] sm:$0xff] %vm1007, %v2276
      %2309 = vst.msk [vmem:[#allocation4 + $0xb8] sm:$0xff] %vm1007, %v2277
      %2310 = vst.msk [vmem:[#allocation4 + $0xc0] sm:$0xff] %vm1007, %v2278
      %2311 = vst.msk [vmem:[#allocation4 + $0xc8] sm:$0xff] %vm1007, %v2279
      %2312 = vst.msk [vmem:[#allocation4 + $0xd0] sm:$0xff] %vm1007, %v2280
      %2313 = vst.msk [vmem:[#allocation4 + $0xd8] sm:$0xff] %vm1007, %v2281
      %2314 = vst.msk [vmem:[#allocation4 + $0xe0] sm:$0xff] %vm1007, %v2282
      %2315 = vst.msk [vmem:[#allocation4 + $0xe8] sm:$0xff] %vm1007, %v2283
      %2316 = vst.msk [vmem:[#allocation4 + $0xf0] sm:$0xff] %vm1007, %v2284
      %2317 = vst.msk [vmem:[#allocation4 + $0xf8] sm:$0xff] %vm1007, %v2285
      %vm2318 = vcmask 7168
      %2319 = vst.msk [vmem:[#allocation3] sm:$0xff] %vm2318, %v1387
      %2320 = vst.msk [vmem:[#allocation3 + $0x8] sm:$0xff] %vm2318, %v1388
      %2321 = vst.msk [vmem:[#allocation3 + $0x10] sm:$0xff] %vm2318, %v1389
      %2322 = vst.msk [vmem:[#allocation3 + $0x18] sm:$0xff] %vm2318, %v1390
      %2323 = vst.msk [vmem:[#allocation3 + $0x20] sm:$0xff] %vm2318, %v1391
      %2324 = vst.msk [vmem:[#allocation3 + $0x28] sm:$0xff] %vm2318, %v1392
      %2325 = vst.msk [vmem:[#allocation3 + $0x30] sm:$0xff] %vm2318, %v1393
      %2326 = vst.msk [vmem:[#allocation3 + $0x38] sm:$0xff] %vm2318, %v1394
      %2327 = vst.msk [vmem:[#allocation3 + $0x40] sm:$0xff] %vm2318, %v1395
      %2328 = vst.msk [vmem:[#allocation3 + $0x48] sm:$0xff] %vm2318, %v1396
      %2329 = vst.msk [vmem:[#allocation3 + $0x50] sm:$0xff] %vm2318, %v1397
      %2330 = vst.msk [vmem:[#allocation3 + $0x58] sm:$0xff] %vm2318, %v1398
      %2331 = vst.msk [vmem:[#allocation3 + $0x60] sm:$0xff] %vm2318, %v1399
      %2332 = vst.msk [vmem:[#allocation3 + $0x68] sm:$0xff] %vm2318, %v1400
      %2333 = vst.msk [vmem:[#allocation3 + $0x70] sm:$0xff] %vm2318, %v1401
      %2334 = vst.msk [vmem:[#allocation3 + $0x78] sm:$0xff] %vm2318, %v1402
      %2335 = vst.msk [vmem:[#allocation3 + $0x80] sm:$0xff] %vm2318, %v1403
      %2336 = vst.msk [vmem:[#allocation3 + $0x88] sm:$0xff] %vm2318, %v1404
      %2337 = vst.msk [vmem:[#allocation3 + $0x90] sm:$0xff] %vm2318, %v1405
      %2338 = vst.msk [vmem:[#allocation3 + $0x98] sm:$0xff] %vm2318, %v1406
      %2339 = vst.msk [vmem:[#allocation3 + $0xa0] sm:$0xff] %vm2318, %v1407
      %2340 = vst.msk [vmem:[#allocation3 + $0xa8] sm:$0xff] %vm2318, %v1408
      %2341 = vst.msk [vmem:[#allocation3 + $0xb0] sm:$0xff] %vm2318, %v1409
      %2342 = vst.msk [vmem:[#allocation3 + $0xb8] sm:$0xff] %vm2318, %v1410
      %2343 = vst.msk [vmem:[#allocation3 + $0xc0] sm:$0xff] %vm2318, %v1411
      %2344 = vst.msk [vmem:[#allocation3 + $0xc8] sm:$0xff] %vm2318, %v1412
      %2345 = vst.msk [vmem:[#allocation3 + $0xd0] sm:$0xff] %vm2318, %v1413
      %2346 = vst.msk [vmem:[#allocation3 + $0xd8] sm:$0xff] %vm2318, %v1414
      %2347 = vst.msk [vmem:[#allocation3 + $0xe0] sm:$0xff] %vm2318, %v1415
      %2348 = vst.msk [vmem:[#allocation3 + $0xe8] sm:$0xff] %vm2318, %v1416
      %2349 = vst.msk [vmem:[#allocation3 + $0xf0] sm:$0xff] %vm2318, %v1417
      %2350 = vst.msk [vmem:[#allocation3 + $0xf8] sm:$0xff] %vm2318, %v1418
      // Predicated region
      $region49: #{attention_slice_pallas.1} parent=43 // pred_check
        %p2351 = pneg %p319
      $region50: #{attention_slice_pallas.1} parent=43 // pred_check_branch
        %2353 = sbr.rel (%p2351) target = $region52
      $region51: #{attention_slice_pallas.1} parent=43 // pred_region
        %v2354 = vld [vmem:[#allocation4] sm:$0xff]
        %v2355 = vld [vmem:[#allocation4 + $0x8] sm:$0xff]
        %v2356 = vld [vmem:[#allocation4 + $0x10] sm:$0xff]
        %v2357 = vld [vmem:[#allocation4 + $0x18] sm:$0xff]
        %v2358 = vld [vmem:[#allocation4 + $0x20] sm:$0xff]
        %v2359 = vld [vmem:[#allocation4 + $0x28] sm:$0xff]
        %v2360 = vld [vmem:[#allocation4 + $0x30] sm:$0xff]
        %v2361 = vld [vmem:[#allocation4 + $0x38] sm:$0xff]
        %v2362 = vld [vmem:[#allocation4 + $0x40] sm:$0xff]
        %v2363 = vld [vmem:[#allocation4 + $0x48] sm:$0xff]
        %v2364 = vld [vmem:[#allocation4 + $0x50] sm:$0xff]
        %v2365 = vld [vmem:[#allocation4 + $0x58] sm:$0xff]
        %v2366 = vld [vmem:[#allocation4 + $0x60] sm:$0xff]
        %v2367 = vld [vmem:[#allocation4 + $0x68] sm:$0xff]
        %v2368 = vld [vmem:[#allocation4 + $0x70] sm:$0xff]
        %v2369 = vld [vmem:[#allocation4 + $0x78] sm:$0xff]
        %v2370 = vld [vmem:[#allocation4 + $0x80] sm:$0xff]
        %v2371 = vld [vmem:[#allocation4 + $0x88] sm:$0xff]
        %v2372 = vld [vmem:[#allocation4 + $0x90] sm:$0xff]
        %v2373 = vld [vmem:[#allocation4 + $0x98] sm:$0xff]
        %v2374 = vld [vmem:[#allocation4 + $0xa0] sm:$0xff]
        %v2375 = vld [vmem:[#allocation4 + $0xa8] sm:$0xff]
        %v2376 = vld [vmem:[#allocation4 + $0xb0] sm:$0xff]
        %v2377 = vld [vmem:[#allocation4 + $0xb8] sm:$0xff]
        %v2378 = vld [vmem:[#allocation4 + $0xc0] sm:$0xff]
        %v2379 = vld [vmem:[#allocation4 + $0xc8] sm:$0xff]
        %v2380 = vld [vmem:[#allocation4 + $0xd0] sm:$0xff]
        %v2381 = vld [vmem:[#allocation4 + $0xd8] sm:$0xff]
        %v2382 = vld [vmem:[#allocation4 + $0xe0] sm:$0xff]
        %v2383 = vld [vmem:[#allocation4 + $0xe8] sm:$0xff]
        %v2384 = vld [vmem:[#allocation4 + $0xf0] sm:$0xff]
        %v2385 = vld [vmem:[#allocation4 + $0xf8] sm:$0xff]
        %v2386 = vrcp.pop %v2354
        %v2387 = vrcp.pop %v2355
        %v2388 = vrcp.pop %v2356
        %v2389 = vrcp.pop %v2357
        %v2390 = vrcp.pop %v2358
        %v2391 = vrcp.pop %v2359
        %v2392 = vrcp.pop %v2360
        %v2393 = vrcp.pop %v2361
        %v2394 = vrcp.pop %v2362
        %v2395 = vrcp.pop %v2363
        %v2396 = vrcp.pop %v2364
        %v2397 = vrcp.pop %v2365
        %v2398 = vrcp.pop %v2366
        %v2399 = vrcp.pop %v2367
        %v2400 = vrcp.pop %v2368
        %v2401 = vrcp.pop %v2369
        %v2402 = vrcp.pop %v2370
        %v2403 = vrcp.pop %v2371
        %v2404 = vrcp.pop %v2372
        %v2405 = vrcp.pop %v2373
        %v2406 = vrcp.pop %v2374
        %v2407 = vrcp.pop %v2375
        %v2408 = vrcp.pop %v2376
        %v2409 = vrcp.pop %v2377
        %v2410 = vrcp.pop %v2378
        %v2411 = vrcp.pop %v2379
        %v2412 = vrcp.pop %v2380
        %v2413 = vrcp.pop %v2381
        %v2414 = vrcp.pop %v2382
        %v2415 = vrcp.pop %v2383
        %v2416 = vrcp.pop %v2384
        %v2417 = vrcp.pop %v2385
        %2419 = vset.pattern.permute.xlu0 4
        %2420 = vperm.xlu0 %2419, %v2386
        %v2421 = vpop.permute.xlu0 %2420
        %2424 = vset.pattern.permute.xlu0 4
        %2425 = vperm.xlu0 %2424, %v2387
        %v2426 = vpop.permute.xlu0 %2425
        %2429 = vset.pattern.permute.xlu0 4
        %2430 = vperm.xlu0 %2429, %v2388
        %v2431 = vpop.permute.xlu0 %2430
        %2434 = vset.pattern.permute.xlu0 4
        %2435 = vperm.xlu0 %2434, %v2389
        %v2436 = vpop.permute.xlu0 %2435
        %2439 = vset.pattern.permute.xlu0 4
        %2440 = vperm.xlu0 %2439, %v2390
        %v2441 = vpop.permute.xlu0 %2440
        %2444 = vset.pattern.permute.xlu0 4
        %2445 = vperm.xlu0 %2444, %v2391
        %v2446 = vpop.permute.xlu0 %2445
        %2449 = vset.pattern.permute.xlu0 4
        %2450 = vperm.xlu0 %2449, %v2392
        %v2451 = vpop.permute.xlu0 %2450
        %2454 = vset.pattern.permute.xlu0 4
        %2455 = vperm.xlu0 %2454, %v2393
        %v2456 = vpop.permute.xlu0 %2455
        %2459 = vset.pattern.permute.xlu0 4
        %2460 = vperm.xlu0 %2459, %v2394
        %v2461 = vpop.permute.xlu0 %2460
        %2464 = vset.pattern.permute.xlu0 4
        %2465 = vperm.xlu0 %2464, %v2395
        %v2466 = vpop.permute.xlu0 %2465
        %2469 = vset.pattern.permute.xlu0 4
        %2470 = vperm.xlu0 %2469, %v2396
        %v2471 = vpop.permute.xlu0 %2470
        %2474 = vset.pattern.permute.xlu0 4
        %2475 = vperm.xlu0 %2474, %v2397
        %v2476 = vpop.permute.xlu0 %2475
        %2479 = vset.pattern.permute.xlu0 4
        %2480 = vperm.xlu0 %2479, %v2398
        %v2481 = vpop.permute.xlu0 %2480
        %2484 = vset.pattern.permute.xlu0 4
        %2485 = vperm.xlu0 %2484, %v2399
        %v2486 = vpop.permute.xlu0 %2485
        %2489 = vset.pattern.permute.xlu0 4
        %2490 = vperm.xlu0 %2489, %v2400
        %v2491 = vpop.permute.xlu0 %2490
        %2494 = vset.pattern.permute.xlu0 4
        %2495 = vperm.xlu0 %2494, %v2401
        %v2496 = vpop.permute.xlu0 %2495
        %2499 = vset.pattern.permute.xlu0 4
        %2500 = vperm.xlu0 %2499, %v2402
        %v2501 = vpop.permute.xlu0 %2500
        %2504 = vset.pattern.permute.xlu0 4
        %2505 = vperm.xlu0 %2504, %v2403
        %v2506 = vpop.permute.xlu0 %2505
        %2509 = vset.pattern.permute.xlu0 4
        %2510 = vperm.xlu0 %2509, %v2404
        %v2511 = vpop.permute.xlu0 %2510
        %2514 = vset.pattern.permute.xlu0 4
        %2515 = vperm.xlu0 %2514, %v2405
        %v2516 = vpop.permute.xlu0 %2515
        %2519 = vset.pattern.permute.xlu0 4
        %2520 = vperm.xlu0 %2519, %v2406
        %v2521 = vpop.permute.xlu0 %2520
        %2524 = vset.pattern.permute.xlu0 4
        %2525 = vperm.xlu0 %2524, %v2407
        %v2526 = vpop.permute.xlu0 %2525
        %2529 = vset.pattern.permute.xlu0 4
        %2530 = vperm.xlu0 %2529, %v2408
        %v2531 = vpop.permute.xlu0 %2530
        %2534 = vset.pattern.permute.xlu0 4
        %2535 = vperm.xlu0 %2534, %v2409
        %v2536 = vpop.permute.xlu0 %2535
        %2539 = vset.pattern.permute.xlu0 4
        %2540 = vperm.xlu0 %2539, %v2410
        %v2541 = vpop.permute.xlu0 %2540
        %2544 = vset.pattern.permute.xlu0 4
        %2545 = vperm.xlu0 %2544, %v2411
        %v2546 = vpop.permute.xlu0 %2545
        %2549 = vset.pattern.permute.xlu0 4
        %2550 = vperm.xlu0 %2549, %v2412
        %v2551 = vpop.permute.xlu0 %2550
        %2554 = vset.pattern.permute.xlu0 4
        %2555 = vperm.xlu0 %2554, %v2413
        %v2556 = vpop.permute.xlu0 %2555
        %2559 = vset.pattern.permute.xlu0 4
        %2560 = vperm.xlu0 %2559, %v2414
        %v2561 = vpop.permute.xlu0 %2560
        %2564 = vset.pattern.permute.xlu0 4
        %2565 = vperm.xlu0 %2564, %v2415
        %v2566 = vpop.permute.xlu0 %2565
        %2569 = vset.pattern.permute.xlu0 4
        %2570 = vperm.xlu0 %2569, %v2416
        %v2571 = vpop.permute.xlu0 %2570
        %2574 = vset.pattern.permute.xlu0 4
        %2575 = vperm.xlu0 %2574, %v2417
        %v2576 = vpop.permute.xlu0 %2575
        %v2578 = vmul.f32 %v2354, %v2421
        %v2579 = vmul.f32 %v2355, %v2426
        %v2580 = vmul.f32 %v2356, %v2431
        %v2581 = vmul.f32 %v2357, %v2436
        %v2582 = vmul.f32 %v2358, %v2441
        %v2583 = vmul.f32 %v2359, %v2446
        %v2584 = vmul.f32 %v2360, %v2451
        %v2585 = vmul.f32 %v2361, %v2456
        %v2586 = vmul.f32 %v2362, %v2461
        %v2587 = vmul.f32 %v2363, %v2466
        %v2588 = vmul.f32 %v2364, %v2471
        %v2589 = vmul.f32 %v2365, %v2476
        %v2590 = vmul.f32 %v2366, %v2481
        %v2591 = vmul.f32 %v2367, %v2486
        %v2592 = vmul.f32 %v2368, %v2491
        %v2593 = vmul.f32 %v2369, %v2496
        %v2594 = vmul.f32 %v2370, %v2501
        %v2595 = vmul.f32 %v2371, %v2506
        %v2596 = vmul.f32 %v2372, %v2511
        %v2597 = vmul.f32 %v2373, %v2516
        %v2598 = vmul.f32 %v2374, %v2521
        %v2599 = vmul.f32 %v2375, %v2526
        %v2600 = vmul.f32 %v2376, %v2531
        %v2601 = vmul.f32 %v2377, %v2536
        %v2602 = vmul.f32 %v2378, %v2541
        %v2603 = vmul.f32 %v2379, %v2546
        %v2604 = vmul.f32 %v2380, %v2551
        %v2605 = vmul.f32 %v2381, %v2556
        %v2606 = vmul.f32 %v2382, %v2561
        %v2607 = vmul.f32 %v2383, %v2566
        %v2608 = vmul.f32 %v2384, %v2571
        %v2609 = vmul.f32 %v2385, %v2576
        %v2610 = vpack.c.bf16 %v2579, %v2578
        %v2611 = vpack.c.bf16 %v2581, %v2580
        %v2612 = vpack.c.bf16 %v2583, %v2582
        %v2613 = vpack.c.bf16 %v2585, %v2584
        %v2614 = vpack.c.bf16 %v2587, %v2586
        %v2615 = vpack.c.bf16 %v2589, %v2588
        %v2616 = vpack.c.bf16 %v2591, %v2590
        %v2617 = vpack.c.bf16 %v2593, %v2592
        %v2618 = vpack.c.bf16 %v2595, %v2594
        %v2619 = vpack.c.bf16 %v2597, %v2596
        %v2620 = vpack.c.bf16 %v2599, %v2598
        %v2621 = vpack.c.bf16 %v2601, %v2600
        %v2622 = vpack.c.bf16 %v2603, %v2602
        %v2623 = vpack.c.bf16 %v2605, %v2604
        %v2624 = vpack.c.bf16 %v2607, %v2606
        %v2625 = vpack.c.bf16 %v2609, %v2608
        %v2626 = vld [vmem:[%s4] sm:$0x3]
        %v2627 = vld [vmem:[%s5] sm:$0xf]
        %2629 = vset.pattern.permute.xlu0 0
        %2630 = vperm.xlu0 %2629, %v2627
        %v2631 = vpop.permute.xlu0 %2630
        %vm2633 = vcmask 31744
        %v2635 = vsel %vm2633, %v2626, 0
        %v2638 = vsel %vm2633, %v2610, 0
        %v2641 = vsel %vm2633, %v2611, 0
        %v2644 = vsel %vm2633, %v2612, 0
        %v2647 = vsel %vm2633, %v2613, 0
        %v2650 = vsel %vm2633, %v2614, 0
        %v2653 = vsel %vm2633, %v2615, 0
        %v2656 = vsel %vm2633, %v2616, 0
        %v2659 = vsel %vm2633, %v2617, 0
        %v2662 = vsel %vm2633, %v2618, 0
        %v2665 = vsel %vm2633, %v2619, 0
        %v2668 = vsel %vm2633, %v2620, 0
        %v2671 = vsel %vm2633, %v2621, 0
        %v2674 = vsel %vm2633, %v2622, 0
        %v2677 = vsel %vm2633, %v2623, 0
        %v2680 = vsel %vm2633, %v2624, 0
        %v2683 = vsel %vm2633, %v2625, 0
        %2685 = vmatprep.subr.bf16.mxu0 0
        %2686 = vmatpush1.bf16.xpose.msra.mxu0 %v2659
        %2687 = vmatprep.subr.bf16.mxu0 0
        %2688 = vmatpush1.bf16.xpose.msra.mxu0 %v2656
        %2689 = vmatprep.subr.bf16.mxu0 0
        %2690 = vmatpush1.bf16.xpose.msra.mxu0 %v2653
        %2691 = vmatprep.subr.bf16.mxu0 0
        %2692 = vmatpush1.bf16.xpose.msra.mxu0 %v2650
        %2693 = vmatprep.subr.bf16.mxu0 0
        %2694 = vmatpush1.bf16.xpose.msra.mxu0 %v2647
        %2695 = vmatprep.subr.bf16.mxu0 0
        %2696 = vmatpush1.bf16.xpose.msra.mxu0 %v2644
        %2697 = vmatprep.subr.bf16.mxu0 0
        %2698 = vmatpush1.bf16.xpose.msra.mxu0 %v2641
        %2699 = vmatprep.subr.bf16.mxu0 0
        %2700 = vmatpush1.bf16.xpose.msra.mxu0 %v2638
        %2701 = vmatprep.subr.bf16.mxu0 0
        %2702 = vmatpush2.bf16.xpose.msra.mxu0 %v2683
        %2703 = vmatprep.subr.bf16.mxu0 0
        %2704 = vmatpush2.bf16.xpose.msra.mxu0 %v2680
        %2705 = vmatprep.subr.bf16.mxu0 0
        %2706 = vmatpush2.bf16.xpose.msra.mxu0 %v2677
        %2707 = vmatprep.subr.bf16.mxu0 0
        %2708 = vmatpush2.bf16.xpose.msra.mxu0 %v2674
        %2709 = vmatprep.subr.bf16.mxu0 0
        %2710 = vmatpush2.bf16.xpose.msra.mxu0 %v2671
        %2711 = vmatprep.subr.bf16.mxu0 0
        %2712 = vmatpush2.bf16.xpose.msra.mxu0 %v2668
        %2713 = vmatprep.subr.bf16.mxu0 0
        %2714 = vmatpush2.bf16.xpose.msra.mxu0 %v2665
        %2715 = vmatprep.subr.bf16.mxu0 0
        %2716 = vmatpush2.bf16.xpose.msra.mxu0 %v2662
        %2717 = vmatprep.mubr.bf16.mxu0 0
        %2718 = vmatmul.mubr.bf16.gmra.mxu0 %v2635
        %v2719 = vpop.f32.mrf.mxu0
        %v2720 = vadd.f32 %v2631, %v2719
        %v2721 = vpop.f32.mrf.mxu0
        %v2722 = vadd.f32 %v2631, %v2721
        %v2723 = vpop.f32.mrf.mxu0
        %v2724 = vpop.f32.mrf.mxu0
        %2725 = vdwg.mxu0
        %v2728 = vcombine.low %v2720, %v2722
        %2730 = vst [vmem:[%s316] sm:$0xff] %v2728
      $region52: #{attention_slice_pallas.1} parent=43 // pred_fallthru
        _
      %s2731 = smul.u32 2, %s23
      %p2732 = scmp.lt.s32.totalorder %s22, 1
      %s2733 = scalar_select %p2732, %s22, 1
      %p2734 = scmp.lt.s32.totalorder %s2731, 1
      %s2735 = scalar_select %p2734, %s2731, 1
      %s2736 = smul.addr %s2733, 2
      %s2737 = sadd.s32 %s2735, %s2736
      %s2738 = smul.addr %s2737, 4
      %s2739 = scalar_lea.vmem %s6, %s2738
      // Predicated region
      $region53: #{attention_slice_pallas.1} parent=43 // pred_check
        %p2740 = pneg %p194
      $region54: #{attention_slice_pallas.1} parent=43 // pred_check_branch
        %2742 = sbr.rel (%p2740) target = $region56
      $region55: #{attention_slice_pallas.1} parent=43 // pred_region
        %s2743 = smul.u32 2, %s23
      $region56: #{attention_slice_pallas.1} parent=43 // pred_fallthru
        _
    $region44: #{attention_slice_pallas.1} parent=5 // pred_fallthru
      _
    %p2744 = scmp.le.s32.totalorder 2, %s12
    // Predicated region
    $region57: #{attention_slice_pallas.1} parent=5 // pred_check
      %p2745 = pneg %p2744
    $region58: #{attention_slice_pallas.1} parent=5 // pred_check_branch
      %2747 = sbr.rel (%p2745) target = $region60
    $region59: #{attention_slice_pallas.1} parent=5 // pred_region
      %s2748 = ssub.s32 %s12, 2
      // Predicated region
      $region61: #{attention_slice_pallas.1} parent=59 // pred_check
        %p2749 = pneg %p200
      $region62: #{attention_slice_pallas.1} parent=59 // pred_check_branch
        %2751 = sbr.rel (%p2749) target = $region64
      $region63: #{attention_slice_pallas.1} parent=59 // pred_region
        %s2752 = smul.u32 2, %s26
        %p2753 = scmp.lt.s32.totalorder %s25, 1
        %s2754 = scalar_select %p2753, %s25, 1
        %p2755 = scmp.lt.s32.totalorder %s2752, 1
        %s2756 = scalar_select %p2755, %s2752, 1
        %s2757 = smul.addr %s2754, 2
        %s2758 = sadd.s32 %s2756, %s2757
        %s2759 = smul.addr %s2758, 4
        %s2760 = scalar_lea.vmem %s6, %s2759
      $region64: #{attention_slice_pallas.1} parent=59 // pred_fallthru
        _
    $region60: #{attention_slice_pallas.1} parent=5 // pred_fallthru
      _
  $region6: #{attention_slice_pallas.1} parent=0 // loop_footer
    %s16 = sadd.s32 1, %s12
  $region7: #{attention_slice_pallas.1} parent=0 // loop_footer_branch
    %11 = sbr.rel target = $region3
  $region8: #{attention_slice_pallas.1} parent=0 // loop_exit
    _

</llo_original>
